<compile_context>
chip_gen: v5e
topology: v5e:2x2
jax: 0.10.0
libtpu: 0.0.40
codegen_flags: <defaults>
</compile_context>

<pallas_src>
import jax
import jax.numpy as jnp
from jax.experimental import pallas as pl
from jax.experimental.pallas import tpu as pltpu


def _bilinear_matrix(out_size: int, in_size: int) -> jnp.ndarray:
    """Interpolation matrix M (out_size, in_size) for bilinear upsampling with
    align_corners=True (the semantics of F.upsample_bilinear).

    NOTE: the out_size == 1 branch samples input pixel 0, which is only valid
    for align_corners=True."""
    if in_size == 1:
        return jnp.ones((out_size, 1), dtype=jnp.float32)
    if out_size == 1:
        m = jnp.zeros((1, in_size), dtype=jnp.float32)
        return m.at[0, 0].set(1.0)
    scale = (in_size - 1) / (out_size - 1)
    src = jnp.arange(out_size, dtype=jnp.float32) * scale
    i0 = jnp.clip(jnp.floor(src).astype(jnp.int32), 0, in_size - 1)
    i1 = jnp.clip(i0 + 1, 0, in_size - 1)
    frac = src - i0.astype(jnp.float32)
    oh0 = jax.nn.one_hot(i0, in_size, dtype=jnp.float32)
    oh1 = jax.nn.one_hot(i1, in_size, dtype=jnp.float32)
    return (1.0 - frac)[:, None] * oh0 + frac[:, None] * oh1


def build_gcam_params(fc_w, fc_b, feat_h, feat_w, img_h, img_w):
    """One-time construction of the kernel operands (hoisted out of the
    per-call path).

      up_hs[h, s] = Uh[h, s // Wf]      (H, S)
      up_sw[s, w] = Uw[w, s %  Wf]      (S, W)

    so heat[b,h,w] = sum_s up_hs[h,s] * Ac_flat[b,s] * up_sw[s,w] is exactly
    bilinear upsampling (align_corners=True) of the (Hf, Wf) map — ~100 KB of
    operator data at ResNet sizes instead of the ~10 MB kron(Uh, Uw).
    Also pads/casts the GAP+FC classifier head so the logits store is a full
    128-lane (unmasked) write."""
    up_h = _bilinear_matrix(img_h, feat_h)            # (H, Hf)
    up_w = _bilinear_matrix(img_w, feat_w)            # (W, Wf)
    s_idx = jnp.arange(feat_h * feat_w)
    up_hs = up_h[:, s_idx // feat_w]                  # (H, S)
    up_sw = up_w[:, s_idx % feat_w].T                 # (S, W)

    nc = fc_w.shape[1]
    ncp = ((nc + 127) // 128) * 128
    fcw_p = jnp.pad(fc_w, ((0, 0), (0, ncp - nc))).astype(jnp.bfloat16)
    fcb_p = jnp.pad(fc_b, (0, ncp - nc)).reshape(1, ncp).astype(jnp.float32)
    return up_hs, up_sw, fcw_p, fcb_p


def _gcam_kernel(fl_ref, gr_ref, uhs_ref, usw_ref, fcw_ref, fcb_ref,
                 logits_ref, heat_ref):
    # fl / gr : (tB, S, C) bf16 — spatial on sublanes, channels lane-dense.
    fl = fl_ref[...]
    gr = gr_ref[...]

    # weights = adaptive_avg_pool2d(backward_features, 1) -> (tB, 1, C), f32.
    w = jnp.mean(gr, axis=1, keepdims=True, dtype=jnp.float32)

    # Ac[b, s] = relu( sum_c w[b, c] * fl[b, s, c] )
    # Batched MXU matmul with the contraction on the lane axis (C) of both
    # operands (QK^T pattern); bf16 operands, f32 accumulation.
    ac = jnp.einsum('bkc,bsc->bks', w.astype(fl.dtype), fl,
                    preferred_element_type=jnp.float32)          # (tB, 1, S)
    ac = jnp.maximum(ac, 0.0)

    # Fused unflatten + separable bilinear upsample (align_corners=True):
    #   heat[b, h, w] = sum_s up_hs[h, s] * Ac[b, s] * up_sw[s, w]
    # One sublane-broadcast multiply + one lane-contraction matmul; no
    # reshapes / transposes, result lands directly in (tB, H, W) layout.
    p = uhs_ref[...][None, :, :] * ac                            # (tB, H, S)
    heat_ref[...] = jnp.einsum('bhs,sw->bhw', p, usw_ref[...],
                               preferred_element_type=jnp.float32)

    # Classifier head stand-in: global-avg-pool + FC, f32 accumulation.
    pooled = jnp.mean(fl, axis=1, dtype=jnp.float32)             # (tB, C)
    logits_ref[...] = jnp.dot(pooled, fcw_ref[...].astype(jnp.float32),
                              preferred_element_type=jnp.float32) + fcb_ref[...]


def gcam_forward(fl_nhwc, grad_nhwc, up_hs, up_sw, fcw_p, fcb_p, *, block_b=8):
    """GCAM hot path.

    fl_nhwc / grad_nhwc: hooked forward features / gradients in NHWC layout
    (B, Hf, Wf, C) — the layout a TPU backbone emits natively, so no
    materializing transpose is needed on the way in.  Returns
    (logits_padded (Bp, NCp), heat (Bp, H, W)) in f32; the caller slices off
    batch / class padding.
    """
    B, Hf, Wf, C = fl_nhwc.shape
    S = Hf * Wf
    H = up_hs.shape[0]
    W = up_sw.shape[1]
    NCp = fcw_p.shape[1]

    # bf16 feature maps: halves the HBM traffic of the dominant inputs.
    flt = fl_nhwc.reshape(B, S, C).astype(jnp.bfloat16)
    grt = grad_nhwc.reshape(B, S, C).astype(jnp.bfloat16)

    tB = block_b
    Bp = ((B + tB - 1) // tB) * tB
    if Bp != B:                                   # zero-pad ragged batch tail
        flt = jnp.pad(flt, ((0, Bp - B), (0, 0), (0, 0)))
        grt = jnp.pad(grt, ((0, Bp - B), (0, 0), (0, 0)))

    grid = (Bp // tB,)
    feat_spec = pl.BlockSpec((tB, S, C), lambda b: (b, 0, 0))
    # Operator / parameter inputs stay resident across grid steps.
    resident = lambda shape: pl.BlockSpec(shape, lambda b: (0,) * len(shape))

    flops = 2 * Bp * (S * C + H * S * W + C * NCp)
    bytes_accessed = (2 * Bp * S * C * 2            # bf16 feature maps
                      + fcw_p.size * 2 + fcb_p.size * 4
                      + up_hs.size * 4 + up_sw.size * 4
                      + Bp * NCp * 4 + Bp * H * W * 4)

    logits_p, heat = pl.pallas_call(
        _gcam_kernel,
        grid=grid,
        in_specs=[
            feat_spec,                               # fl    (bf16)
            feat_spec,                               # grads (bf16)
            resident((H, S)),                        # up_hs (f32)
            resident((S, W)),                        # up_sw (f32)
            resident((C, NCp)),                      # fc_w  (bf16)
            resident((1, NCp)),                      # fc_b  (f32)
        ],
        out_specs=(
            pl.BlockSpec((tB, NCp), lambda b: (b, 0)),
            pl.BlockSpec((tB, H, W), lambda b: (b, 0, 0)),
        ),
        out_shape=(
            jax.ShapeDtypeStruct((Bp, NCp), jnp.float32),
            jax.ShapeDtypeStruct((Bp, H, W), jnp.float32),
        ),
        compiler_params=pltpu.CompilerParams(
            dimension_semantics=("parallel",),
            vmem_limit_bytes=64 * 1024 * 1024),
        cost_estimate=pl.CostEstimate(
            flops=int(flops), transcendentals=0,
            bytes_accessed=int(bytes_accessed)),
    )(flt, grt, up_hs, up_sw, fcw_p, fcb_p)
    return logits_p, heat


def _reference(fl_nchw, grad_nchw, fc_w, fc_b, img_h, img_w):
    """Pure-JAX f32 reference of the same math (PyTorch semantics, NCHW)."""
    w = jnp.mean(grad_nchw, axis=(2, 3), keepdims=True)
    ac = jnp.maximum(jnp.sum(fl_nchw * w, axis=1, keepdims=True), 0.0)
    uh = _bilinear_matrix(img_h, fl_nchw.shape[2])
    uw = _bilinear_matrix(img_w, fl_nchw.shape[3])
    heat = jnp.einsum('hi,bcij,wj->bchw', uh, ac, uw)
    pooled = jnp.mean(fl_nchw, axis=(2, 3))
    logits = pooled @ fc_w + fc_b[None, :]
    return logits, heat


if __name__ == "__main__":
    key = jax.random.PRNGKey(0)
    B, C, Hf, Wf = 16, 128, 8, 8        # feature maps at the hooked layer
    img_h, img_w = 32, 32               # input image spatial size
    num_classes = 10

    k1, k2, k3, k4 = jax.random.split(key, 4)
    # Synthetic stand-ins for the hooked activations / gradients, generated
    # directly in NHWC (TPU-native) layout so no transpose enters the path.
    # TODO(synk): the resnet50 fwd/bwd pass that produces these hooked feature
    # maps (and the real classifier logits) is not reproduced here.
    fl_nhwc = jax.random.normal(k1, (B, Hf, Wf, C), dtype=jnp.float32)
    gr_nhwc = jax.random.normal(k2, (B, Hf, Wf, C), dtype=jnp.float32)
    fc_w = 0.05 * jax.random.normal(k3, (C, num_classes), dtype=jnp.float32)
    fc_b = 0.01 * jax.random.normal(k4, (num_classes,), dtype=jnp.float32)

    # One-time operator construction (hoisted out of the per-call path).
    up_hs, up_sw, fcw_p, fcb_p = build_gcam_params(fc_w, fc_b, Hf, Wf,
                                                   img_h, img_w)

    fwd = jax.jit(gcam_forward)
    logits_p, heat3 = fwd(fl_nhwc, gr_nhwc, up_hs, up_sw, fcw_p, fcb_p)
    jax.block_until_ready((logits_p, heat3))

    logits = logits_p[:B, :num_classes]
    heatmap = heat3[:B].reshape(B, 1, img_h, img_w)

    # Reference uses the same bf16-rounded features / FC weights (the kernel
    # quantizes them for HBM traffic; all accumulation stays f32).
    q = lambda x: x.astype(jnp.bfloat16).astype(jnp.float32)
    fl_nchw = jnp.transpose(q(fl_nhwc), (0, 3, 1, 2))
    gr_nchw = jnp.transpose(q(gr_nhwc), (0, 3, 1, 2))
    ref_logits, ref_heat = _reference(fl_nchw, gr_nchw,
                                      q(fcw_p)[:, :num_classes],
                                      fcb_p[0, :num_classes], img_h, img_w)

    assert logits.shape == (B, num_classes)
    assert heatmap.shape == (B, 1, img_h, img_w)
    assert jnp.allclose(logits, ref_logits, atol=2e-2, rtol=2e-2), \
        float(jnp.max(jnp.abs(logits - ref_logits)))
    assert jnp.allclose(heatmap, ref_heat, atol=2e-2, rtol=2e-2), \
        float(jnp.max(jnp.abs(heatmap - ref_heat)))
    print("KERNEL_OK")
</pallas_src>

<mosaic_0001>
module attributes {stable_mosaic.version = 11 : i64} {
  func.func @_gcam_kernel(%arg0: i32, %arg1: memref<8x64x128xbf16, #tpu.memory_space<vmem>>, %arg2: memref<8x64x128xbf16, #tpu.memory_space<vmem>>, %arg3: memref<32x64xf32, #tpu.memory_space<vmem>>, %arg4: memref<64x32xf32, #tpu.memory_space<vmem>>, %arg5: memref<128x128xbf16, #tpu.memory_space<vmem>>, %arg6: memref<1x128xf32, #tpu.memory_space<vmem>>, %arg7: memref<8x128xf32, #tpu.memory_space<vmem>>, %arg8: memref<8x32x32xf32, #tpu.memory_space<vmem>>) attributes {dimension_semantics = [#tpu.dimension_semantics<parallel>], iteration_bounds = array<i64: 2>, scalar_prefetch = 0 : i64, scratch_operands = 0 : i64, tpu.core_type = #tpu.core_type<tc>, window_params = [{transform_indices = @transform_0, window_bounds = array<i64: 8, 64, 128>}, {transform_indices = @transform_1, window_bounds = array<i64: 8, 64, 128>}, {pipeline_mode = #tpu.pipeline_mode<synchronous>, transform_indices = @transform_2, window_bounds = array<i64: 32, 64>}, {pipeline_mode = #tpu.pipeline_mode<synchronous>, transform_indices = @transform_3, window_bounds = array<i64: 64, 32>}, {pipeline_mode = #tpu.pipeline_mode<synchronous>, transform_indices = @transform_4, window_bounds = array<i64: 128, 128>}, {pipeline_mode = #tpu.pipeline_mode<synchronous>, transform_indices = @transform_5, window_bounds = array<i64: 1, 128>}, {transform_indices = @transform_6, window_bounds = array<i64: 8, 128>}, {transform_indices = @transform_7, window_bounds = array<i64: 8, 32, 32>}]} {
    %c0 = arith.constant 0 : index
    %c0_0 = arith.constant 0 : index
    %c0_1 = arith.constant 0 : index
    %0 = vector.load %arg1[%c0, %c0_0, %c0_1] : memref<8x64x128xbf16, #tpu.memory_space<vmem>>, vector<8x64x128xbf16>
    %c0_2 = arith.constant 0 : index
    %c0_3 = arith.constant 0 : index
    %c0_4 = arith.constant 0 : index
    %1 = vector.load %arg2[%c0_2, %c0_3, %c0_4] : memref<8x64x128xbf16, #tpu.memory_space<vmem>>, vector<8x64x128xbf16>
    %2 = arith.extf %1 : vector<8x64x128xbf16> to vector<8x64x128xf32>
    %cst = arith.constant dense<0.000000e+00> : vector<8x128xf32>
    %3 = vector.multi_reduction <add>, %2, %cst [1] : vector<8x64x128xf32> to vector<8x128xf32>
    %4 = vector.shape_cast %3 : vector<8x128xf32> to vector<8x1x128xf32>
    %cst_5 = arith.constant 6.400000e+01 : f32
    %5 = vector.broadcast %cst_5 : f32 to vector<8x1x128xf32>
    %6 = arith.divf %4, %5 : vector<8x1x128xf32>
    %7 = arith.truncf %6 : vector<8x1x128xf32> to vector<8x1x128xbf16>
    "tpu.trace_start"() <{level = 10 : i32, message = "bkc,bsc->bks"}> : () -> ()
    %cst_6 = arith.constant dense<0.000000e+00> : vector<8x1x64xf32>
    %8 = tpu.matmul %7, %0, %cst_6 {dimension_numbers = #tpu.dot_dimension_numbers<[2], [2], [1], [1], [0, 0, 0, 1, 1, 1], [0], [0]>} : vector<8x1x128xbf16>, vector<8x64x128xbf16>, vector<8x1x64xf32> -> vector<8x1x64xf32>
    "tpu.trace_stop"() : () -> ()
    %cst_7 = arith.constant 0.000000e+00 : f32
    %9 = vector.broadcast %cst_7 : f32 to vector<8x1x64xf32>
    %10 = arith.maximumf %8, %9 : vector<8x1x64xf32>
    %c0_8 = arith.constant 0 : index
    %c0_9 = arith.constant 0 : index
    %11 = vector.load %arg3[%c0_8, %c0_9] : memref<32x64xf32, #tpu.memory_space<vmem>>, vector<32x64xf32>
    %12 = vector.shape_cast %11 : vector<32x64xf32> to vector<1x32x64xf32>
    %13 = vector.broadcast %12 : vector<1x32x64xf32> to vector<8x32x64xf32>
    %14 = vector.broadcast %10 : vector<8x1x64xf32> to vector<8x32x64xf32>
    %15 = arith.mulf %13, %14 : vector<8x32x64xf32>
    %c0_10 = arith.constant 0 : index
    %c0_11 = arith.constant 0 : index
    %16 = vector.load %arg4[%c0_10, %c0_11] : memref<64x32xf32, #tpu.memory_space<vmem>>, vector<64x32xf32>
    "tpu.trace_start"() <{level = 10 : i32, message = "bhs,sw->bhw"}> : () -> ()
    %cst_12 = arith.constant dense<0.000000e+00> : vector<8x32x32xf32>
    %17 = tpu.matmul %15, %16, %cst_12 {dimension_numbers = #tpu.dot_dimension_numbers<[2], [0], [0, 1], [1], [0, 0, 0, 1, 1, 1], [], []>} : vector<8x32x64xf32>, vector<64x32xf32>, vector<8x32x32xf32> -> vector<8x32x32xf32>
    "tpu.trace_stop"() : () -> ()
    %c0_13 = arith.constant 0 : index
    %c0_14 = arith.constant 0 : index
    %c0_15 = arith.constant 0 : index
    %18 = vector.load %arg8[%c0_13, %c0_14, %c0_15] : memref<8x32x32xf32, #tpu.memory_space<vmem>>, vector<8x32x32xf32>
    tpu.vector_store %arg8[%c0_13, %c0_14, %c0_15], %17 {strides = array<i32>} : memref<8x32x32xf32, #tpu.memory_space<vmem>>, vector<8x32x32xf32>,
    %19 = arith.extf %0 : vector<8x64x128xbf16> to vector<8x64x128xf32>
    %cst_16 = arith.constant dense<0.000000e+00> : vector<8x128xf32>
    %20 = vector.multi_reduction <add>, %19, %cst_16 [1] : vector<8x64x128xf32> to vector<8x128xf32>
    %cst_17 = arith.constant 6.400000e+01 : f32
    %21 = vector.broadcast %cst_17 : f32 to vector<8x128xf32>
    %22 = arith.divf %20, %21 : vector<8x128xf32>
    %c0_18 = arith.constant 0 : index
    %c0_19 = arith.constant 0 : index
    %23 = vector.load %arg5[%c0_18, %c0_19] : memref<128x128xbf16, #tpu.memory_space<vmem>>, vector<128x128xbf16>
    %24 = arith.extf %23 : vector<128x128xbf16> to vector<128x128xf32>
    %cst_20 = arith.constant dense<0.000000e+00> : vector<8x128xf32>
    %25 = tpu.matmul %22, %24, %cst_20 {dimension_numbers = #tpu.dot_dimension_numbers<[1], [0], [0], [1], [0, 0, 1, 1], [], []>} : vector<8x128xf32>, vector<128x128xf32>, vector<8x128xf32> -> vector<8x128xf32>
    %c0_21 = arith.constant 0 : index
    %c0_22 = arith.constant 0 : index
    %26 = vector.load %arg6[%c0_21, %c0_22] : memref<1x128xf32, #tpu.memory_space<vmem>>, vector<1x128xf32>
    %27 = vector.broadcast %26 : vector<1x128xf32> to vector<8x128xf32>
    %28 = arith.addf %25, %27 : vector<8x128xf32>
    %c0_23 = arith.constant 0 : index
    %c0_24 = arith.constant 0 : index
    %29 = vector.load %arg7[%c0_23, %c0_24] : memref<8x128xf32, #tpu.memory_space<vmem>>, vector<8x128xf32>
    tpu.vector_store %arg7[%c0_23, %c0_24], %28 {strides = array<i32>} : memref<8x128xf32, #tpu.memory_space<vmem>>, vector<8x128xf32>,
    return
  }
  func.func @transform_0(%arg0: i32) -> (i32, i32, i32) {
    %c0_i32 = arith.constant 0 : i32
    %c0_i32_0 = arith.constant 0 : i32
    %c0_i32_1 = arith.constant 0 : i32
    return %arg0, %c0_i32, %c0_i32_0 : i32, i32, i32
  }
  func.func @transform_1(%arg0: i32) -> (i32, i32, i32) {
    %c0_i32 = arith.constant 0 : i32
    %c0_i32_0 = arith.constant 0 : i32
    %c0_i32_1 = arith.constant 0 : i32
    return %arg0, %c0_i32, %c0_i32_0 : i32, i32, i32
  }
  func.func @transform_2(%arg0: i32) -> (i32, i32) {
    %c0_i32 = arith.constant 0 : i32
    %c0_i32_0 = arith.constant 0 : i32
    %c0_i32_1 = arith.constant 0 : i32
    return %c0_i32, %c0_i32_0 : i32, i32
  }
  func.func @transform_3(%arg0: i32) -> (i32, i32) {
    %c0_i32 = arith.constant 0 : i32
    %c0_i32_0 = arith.constant 0 : i32
    %c0_i32_1 = arith.constant 0 : i32
    return %c0_i32, %c0_i32_0 : i32, i32
  }
  func.func @transform_4(%arg0: i32) -> (i32, i32) {
    %c0_i32 = arith.constant 0 : i32
    %c0_i32_0 = arith.constant 0 : i32
    %c0_i32_1 = arith.constant 0 : i32
    return %c0_i32, %c0_i32_0 : i32, i32
  }
  func.func @transform_5(%arg0: i32) -> (i32, i32) {
    %c0_i32 = arith.constant 0 : i32
    %c0_i32_0 = arith.constant 0 : i32
    %c0_i32_1 = arith.constant 0 : i32
    return %c0_i32, %c0_i32_0 : i32, i32
  }
  func.func @transform_6(%arg0: i32) -> (i32, i32) {
    %c0_i32 = arith.constant 0 : i32
    %c0_i32_0 = arith.constant 0 : i32
    return %arg0, %c0_i32 : i32, i32
  }
  func.func @transform_7(%arg0: i32) -> (i32, i32, i32) {
    %c0_i32 = arith.constant 0 : i32
    %c0_i32_0 = arith.constant 0 : i32
    %c0_i32_1 = arith.constant 0 : i32
    return %arg0, %c0_i32, %c0_i32_0 : i32, i32, i32
  }
}

</mosaic_0001>

<llo_original>
// kernel: gcam_forward.1
$region0: #{gcam_forward.1}
  #allocation0 [shape = 'u32[]', space=smem, size = 0x4, offset = 0x4, fixed_abs, tag = 'smem constant byte address 0x4 - core index']
  #allocation1 [shape = 'u32[72,128]{1,0:T(1,128)}', space=vmem, size = 0x9000, scoped, tag = 'internal scratch']
  %s0 = inlined_call_operand.vmem [shape: bf16[16,64,128], index: 0, kind: input, shape index: {}]
  %s1 = inlined_call_operand.vmem [shape: bf16[16,64,128], index: 1, kind: input, shape index: {}]
  %s2 = inlined_call_operand.vmem [shape: f32[32,64], index: 2, kind: input, shape index: {}]
  %s3 = inlined_call_operand.vmem [shape: f32[64,32], index: 3, kind: input, shape index: {}]
  %s4 = inlined_call_operand.vmem [shape: bf16[128,128], index: 4, kind: input, shape index: {}]
  %s5 = inlined_call_operand.vmem [shape: f32[1,128], index: 5, kind: input, shape index: {}]
  %s6 = inlined_call_operand.hbm [shape: f32[16,128], index: 6, kind: output, shape index: {0}]
  %s7 = inlined_call_operand.hbm [shape: f32[16,32,32], index: 7, kind: output, shape index: {1}]
  %8 = xla_tuple %s6, %s7
  %s9 = sld [smem:[#allocation0]]
  $region65: #{gcam_forward.1} parent=0
    _
  %s11 = ssub.s32 1, %s9
  %s12 = scalar_select 0, %s11, %s9
  $region1: #{gcam_forward.1} parent=0
    #allocation2 [shape = 'u8[8192]{0}', space=vmem, size = 0x2000, scoped, tag = 'output window, operand 0']
    #allocation3 [shape = 's32[2]{0}', space=sflag, size = 0x8, scoped, tag = 'scoped memory for gcam_forward.1']
    #allocation4 [shape = 'u8[262144]{0}', space=vmem, size = 0x40000, scoped, tag = 'output window, operand 1']
    #allocation5 [shape = 's32[2]{0}', space=sflag, size = 0x8, scoped, tag = 'scoped memory for gcam_forward.1']
    %13 = vsyncpa [#allocation3], 0
    %s14 = scalar_lea.sflag [#allocation3], 1
    %15 = vsyncpa %s14, 0
    %16 = vsyncpa [#allocation5], 0
    %s17 = scalar_lea.sflag [#allocation5], 1
    %18 = vsyncpa %s17, 0
    loop: start=0, step=1, limit=4
    $region2: #{gcam_forward.1} parent=1 // loop_pre_header
      _
    $region3: #{gcam_forward.1} parent=1 // loop_header
      %s20 = sphi 0, %s24
      %p21 = scmp.ge.s32.totalorder %s20, 4
      %s30 = sphi 0, %s32
      %s33 = sphi 0, %s30
      %s34 = sphi 0, %s33
      %s50 = sphi 0, %s34
      %s56 = sphi 0, %s58
      %s59 = sphi 0, %s56
      %s60 = sphi 0, %s59
      %s76 = sphi 0, %s60
      %s80 = sphi 0, %s80
      %s82 = sphi 0, %s80
      %s83 = sphi 0, %s82
      %s97 = sphi 0, %s83
      %s101 = sphi 0, %s101
      %s103 = sphi 0, %s101
      %s104 = sphi 0, %s103
      %s118 = sphi 0, %s104
      %s122 = sphi 0, %s122
      %s124 = sphi 0, %s122
      %s125 = sphi 0, %s124
      %s139 = sphi 0, %s125
      %s143 = sphi 0, %s143
      %s145 = sphi 0, %s143
      %s146 = sphi 0, %s145
      %s160 = sphi 0, %s146
      %s166 = sphi 0, %s168
      %s169 = sphi 0, %s166
      %s170 = sphi 0, %s169
      %s186 = sphi 0, %s170
      %s192 = sphi 0, %s194
      %s195 = sphi 0, %s192
      %s196 = sphi 0, %s195
      %s212 = sphi 0, %s196
    $region4: #{gcam_forward.1} parent=1 // loop_header_branch
      %23 = sbr.rel (%p21) target = $region8
    $region5: #{gcam_forward.1} parent=1 // loop_body
      %s25 = ssub.s32 %s20, 1
      %s26 = ssub.s32 %s20, 2
      %s27 = sadd.s32 %s20, 1
      %s28 = ssub.s32 %s20, %s27
      %p29 = scmp.eq.s32.totalorder %s28, 0
      %s31 = sadd.s32 %s30, 1
      %s32 = scalar_select %p29, %s30, %s31
      %p35 = pneg %p29
      %p36 = scmp.eq.s32.totalorder %s20, 1
      %p37 = por %p35, %p36
      %p38 = scmp.ne.s32.totalorder %s30, %s33
      %p39 = scmp.eq.s32.totalorder %s20, 0
      %p40 = por %p38, %p39
      %p41 = scmp.ne.s32.totalorder %s30, %s33
      %p42 = scmp.eq.s32.totalorder %s25, 1
      %p43 = por %p41, %p42
      %p44 = scmp.ne.s32.totalorder %s33, %s34
      %p45 = scmp.eq.s32.totalorder %s25, 0
      %p46 = por %p44, %p45
      %p47 = scmp.ne.s32.totalorder %s33, %s34
      %p48 = scmp.eq.s32.totalorder %s26, 1
      %p49 = por %p47, %p48
      %p51 = scmp.ne.s32.totalorder %s34, %s50
      %p52 = scmp.eq.s32.totalorder %s26, 0
      %p53 = por %p51, %p52
      %s54 = ssub.s32 %s20, %s27
      %p55 = scmp.eq.s32.totalorder %s54, 0
      %s57 = sadd.s32 %s56, 1
      %s58 = scalar_select %p55, %s56, %s57
      %p61 = pneg %p55
      %p62 = scmp.eq.s32.totalorder %s20, 1
      %p63 = por %p61, %p62
      %p64 = scmp.ne.s32.totalorder %s56, %s59
      %p65 = scmp.eq.s32.totalorder %s20, 0
      %p66 = por %p64, %p65
      %p67 = scmp.ne.s32.totalorder %s56, %s59
      %p68 = scmp.eq.s32.totalorder %s25, 1
      %p69 = por %p67, %p68
      %p70 = scmp.ne.s32.totalorder %s59, %s60
      %p71 = scmp.eq.s32.totalorder %s25, 0
      %p72 = por %p70, %p71
      %p73 = scmp.ne.s32.totalorder %s59, %s60
      %p74 = scmp.eq.s32.totalorder %s26, 1
      %p75 = por %p73, %p74
      %p77 = scmp.ne.s32.totalorder %s60, %s76
      %p78 = scmp.eq.s32.totalorder %s26, 0
      %p79 = por %p77, %p78
      %s81 = sadd.s32 %s80, 1
      %p84 = scmp.eq.s32.totalorder %s20, 1
      %p85 = scmp.ne.s32.totalorder %s80, %s82
      %p86 = scmp.eq.s32.totalorder %s20, 0
      %p87 = por %p85, %p86
      %p88 = scmp.ne.s32.totalorder %s80, %s82
      %p89 = scmp.eq.s32.totalorder %s25, 1
      %p90 = por %p88, %p89
      %p91 = scmp.ne.s32.totalorder %s82, %s83
      %p92 = scmp.eq.s32.totalorder %s25, 0
      %p93 = por %p91, %p92
      %p94 = scmp.ne.s32.totalorder %s82, %s83
      %p95 = scmp.eq.s32.totalorder %s26, 1
      %p96 = por %p94, %p95
      %p98 = scmp.ne.s32.totalorder %s83, %s97
      %p99 = scmp.eq.s32.totalorder %s26, 0
      %p100 = por %p98, %p99
      %s102 = sadd.s32 %s101, 1
      %p105 = scmp.eq.s32.totalorder %s20, 1
      %p106 = scmp.ne.s32.totalorder %s101, %s103
      %p107 = scmp.eq.s32.totalorder %s20, 0
      %p108 = por %p106, %p107
      %p109 = scmp.ne.s32.totalorder %s101, %s103
      %p110 = scmp.eq.s32.totalorder %s25, 1
      %p111 = por %p109, %p110
      %p112 = scmp.ne.s32.totalorder %s103, %s104
      %p113 = scmp.eq.s32.totalorder %s25, 0
      %p114 = por %p112, %p113
      %p115 = scmp.ne.s32.totalorder %s103, %s104
      %p116 = scmp.eq.s32.totalorder %s26, 1
      %p117 = por %p115, %p116
      %p119 = scmp.ne.s32.totalorder %s104, %s118
      %p120 = scmp.eq.s32.totalorder %s26, 0
      %p121 = por %p119, %p120
      %s123 = sadd.s32 %s122, 1
      %p126 = scmp.eq.s32.totalorder %s20, 1
      %p127 = scmp.ne.s32.totalorder %s122, %s124
      %p128 = scmp.eq.s32.totalorder %s20, 0
      %p129 = por %p127, %p128
      %p130 = scmp.ne.s32.totalorder %s122, %s124
      %p131 = scmp.eq.s32.totalorder %s25, 1
      %p132 = por %p130, %p131
      %p133 = scmp.ne.s32.totalorder %s124, %s125
      %p134 = scmp.eq.s32.totalorder %s25, 0
      %p135 = por %p133, %p134
      %p136 = scmp.ne.s32.totalorder %s124, %s125
      %p137 = scmp.eq.s32.totalorder %s26, 1
      %p138 = por %p136, %p137
      %p140 = scmp.ne.s32.totalorder %s125, %s139
      %p141 = scmp.eq.s32.totalorder %s26, 0
      %p142 = por %p140, %p141
      %s144 = sadd.s32 %s143, 1
      %p147 = scmp.eq.s32.totalorder %s20, 1
      %p148 = scmp.ne.s32.totalorder %s143, %s145
      %p149 = scmp.eq.s32.totalorder %s20, 0
      %p150 = por %p148, %p149
      %p151 = scmp.ne.s32.totalorder %s143, %s145
      %p152 = scmp.eq.s32.totalorder %s25, 1
      %p153 = por %p151, %p152
      %p154 = scmp.ne.s32.totalorder %s145, %s146
      %p155 = scmp.eq.s32.totalorder %s25, 0
      %p156 = por %p154, %p155
      %p157 = scmp.ne.s32.totalorder %s145, %s146
      %p158 = scmp.eq.s32.totalorder %s26, 1
      %p159 = por %p157, %p158
      %p161 = scmp.ne.s32.totalorder %s146, %s160
      %p162 = scmp.eq.s32.totalorder %s26, 0
      %p163 = por %p161, %p162
      %s164 = ssub.s32 %s20, %s27
      %p165 = scmp.eq.s32.totalorder %s164, 0
      %s167 = sadd.s32 %s166, 1
      %s168 = scalar_select %p165, %s166, %s167
      %p171 = pneg %p165
      %p172 = scmp.eq.s32.totalorder %s20, 1
      %p173 = por %p171, %p172
      %p174 = scmp.ne.s32.totalorder %s166, %s169
      %p175 = scmp.eq.s32.totalorder %s20, 0
      %p176 = por %p174, %p175
      %p177 = scmp.ne.s32.totalorder %s166, %s169
      %p178 = scmp.eq.s32.totalorder %s25, 1
      %p179 = por %p177, %p178
      %p180 = scmp.ne.s32.totalorder %s169, %s170
      %p181 = scmp.eq.s32.totalorder %s25, 0
      %p182 = por %p180, %p181
      %p183 = scmp.ne.s32.totalorder %s169, %s170
      %p184 = scmp.eq.s32.totalorder %s26, 1
      %p185 = por %p183, %p184
      %p187 = scmp.ne.s32.totalorder %s170, %s186
      %p188 = scmp.eq.s32.totalorder %s26, 0
      %p189 = por %p187, %p188
      %s190 = ssub.s32 %s20, %s27
      %p191 = scmp.eq.s32.totalorder %s190, 0
      %s193 = sadd.s32 %s192, 1
      %s194 = scalar_select %p191, %s192, %s193
      %p197 = pneg %p191
      %p198 = scmp.eq.s32.totalorder %s20, 1
      %p199 = por %p197, %p198
      %p200 = scmp.ne.s32.totalorder %s192, %s195
      %p201 = scmp.eq.s32.totalorder %s20, 0
      %p202 = por %p200, %p201
      %p203 = scmp.ne.s32.totalorder %s192, %s195
      %p204 = scmp.eq.s32.totalorder %s25, 1
      %p205 = por %p203, %p204
      %p206 = scmp.ne.s32.totalorder %s195, %s196
      %p207 = scmp.eq.s32.totalorder %s25, 0
      %p208 = por %p206, %p207
      %p209 = scmp.ne.s32.totalorder %s195, %s196
      %p210 = scmp.eq.s32.totalorder %s26, 1
      %p211 = por %p209, %p210
      %p213 = scmp.ne.s32.totalorder %s196, %s212
      %p214 = scmp.eq.s32.totalorder %s26, 0
      %p215 = por %p213, %p214
      %p216 = scmp.le.s32.totalorder 1, %s20
      %p217 = scmp.lt.s32.totalorder %s20, 3
      %p218 = pnand %p216, %p217
      %p219 = pneg %p218
      // Predicated region
      $region9: #{gcam_forward.1} parent=5 // pred_check
        _
      $region10: #{gcam_forward.1} parent=5 // pred_check_branch
        %221 = sbr.rel (%p218) target = $region12
      $region11: #{gcam_forward.1} parent=5 // pred_region
        %s222 = ssub.s32 %s20, 1
        // Predicated region
        $region13: #{gcam_forward.1} parent=11 // pred_check
          %p223 = pneg %p93
        $region14: #{gcam_forward.1} parent=11 // pred_check_branch
          %225 = sbr.rel (%p223) target = $region16
        $region15: #{gcam_forward.1} parent=11 // pred_region
          _
        $region16: #{gcam_forward.1} parent=11 // pred_fallthru
          _
        // Predicated region
        $region17: #{gcam_forward.1} parent=11 // pred_check
          %p226 = pneg %p114
        $region18: #{gcam_forward.1} parent=11 // pred_check_branch
          %228 = sbr.rel (%p226) target = $region20
        $region19: #{gcam_forward.1} parent=11 // pred_region
          _
        $region20: #{gcam_forward.1} parent=11 // pred_fallthru
          _
        // Predicated region
        $region21: #{gcam_forward.1} parent=11 // pred_check
          %p229 = pneg %p135
        $region22: #{gcam_forward.1} parent=11 // pred_check_branch
          %231 = sbr.rel (%p229) target = $region24
        $region23: #{gcam_forward.1} parent=11 // pred_region
          _
        $region24: #{gcam_forward.1} parent=11 // pred_fallthru
          _
        // Predicated region
        $region25: #{gcam_forward.1} parent=11 // pred_check
          %p232 = pneg %p156
        $region26: #{gcam_forward.1} parent=11 // pred_check_branch
          %234 = sbr.rel (%p232) target = $region28
        $region27: #{gcam_forward.1} parent=11 // pred_region
          _
        $region28: #{gcam_forward.1} parent=11 // pred_fallthru
          _
      $region12: #{gcam_forward.1} parent=5 // pred_fallthru
        _
      %p235 = scmp.lt.s32.totalorder %s20, 2
      // Predicated region
      $region29: #{gcam_forward.1} parent=5 // pred_check
        %p236 = pneg %p235
      $region30: #{gcam_forward.1} parent=5 // pred_check_branch
        %238 = sbr.rel (%p236) target = $region32
      $region31: #{gcam_forward.1} parent=5 // pred_region
        // Predicated region
        $region33: #{gcam_forward.1} parent=31 // pred_check
          %p239 = pneg %p40
        $region34: #{gcam_forward.1} parent=31 // pred_check_branch
          %241 = sbr.rel (%p239) target = $region36
        $region35: #{gcam_forward.1} parent=31 // pred_region
          %s242 = smul.u32 8, %s20
          %p243 = scmp.lt.s32.totalorder %s242, 15
          %s244 = scalar_select %p243, %s242, 15
          %s245 = smul.addr %s244, 8
          %s246 = smul.addr %s245, 4
          %s247 = scalar_lea.vmem %s0, %s246
          %s248 = smul.u32 8, %s20
        $region36: #{gcam_forward.1} parent=31 // pred_fallthru
          _
        // Predicated region
        $region37: #{gcam_forward.1} parent=31 // pred_check
          %p249 = pneg %p66
        $region38: #{gcam_forward.1} parent=31 // pred_check_branch
          %251 = sbr.rel (%p249) target = $region40
        $region39: #{gcam_forward.1} parent=31 // pred_region
          %s252 = smul.u32 8, %s20
          %p253 = scmp.lt.s32.totalorder %s252, 15
          %s254 = scalar_select %p253, %s252, 15
          %s255 = smul.addr %s254, 8
          %s256 = smul.addr %s255, 4
          %s257 = scalar_lea.vmem %s1, %s256
          %s258 = smul.u32 8, %s20
        $region40: #{gcam_forward.1} parent=31 // pred_fallthru
          _
      $region32: #{gcam_forward.1} parent=5 // pred_fallthru
        _
      %p259 = scmp.le.s32.totalorder 1, %s20
      %p260 = scmp.lt.s32.totalorder %s20, 3
      %p261 = pnand %p259, %p260
      %p262 = pneg %p261
      // Predicated region
      $region41: #{gcam_forward.1} parent=5 // pred_check
        _
      $region42: #{gcam_forward.1} parent=5 // pred_check_branch
        %264 = sbr.rel (%p261) target = $region44
      $region43: #{gcam_forward.1} parent=5 // pred_region
        %s265 = ssub.s32 %s20, 1
        %s266 = smul.u32 8, %s25
        %p267 = scmp.lt.s32.totalorder %s266, 15
        %s268 = scalar_select %p267, %s266, 15
        %s269 = smul.addr %s268, 8
        %s270 = smul.addr %s269, 4
        %s271 = scalar_lea.vmem %s0, %s270
        %p272 = pneg %p46
        %p273 = pneg %p43
        %s274 = smul.u32 8, %s25
        %p275 = scmp.lt.s32.totalorder %s274, 15
        %s276 = scalar_select %p275, %s274, 15
        %s277 = smul.addr %s276, 8
        %s278 = smul.addr %s277, 4
        %s279 = scalar_lea.vmem %s1, %s278
        %p280 = pneg %p72
        %p281 = pneg %p69
        %p282 = pneg %p93
        %p283 = pneg %p90
        %p284 = pneg %p114
        %p285 = pneg %p111
        %p286 = pneg %p135
        %p287 = pneg %p132
        %p288 = pneg %p156
        %p289 = pneg %p153
        %p290 = pneg %p182
        %p291 = pneg %p179
        %s292 = sand.u32 %s169, 1
        %s293 = scalar_lea.sflag [#allocation3], %s292
        %s294 = sand.u32 %s169, 1
        %s295 = smul.addr %s294, 8
        %s296 = scalar_lea.vmem [#allocation2], %s295
        %p297 = pneg %p208
        %p298 = pneg %p205
        %s299 = sand.u32 %s195, 1
        %s300 = scalar_lea.sflag [#allocation5], %s299
        %s301 = sand.u32 %s195, 1
        %s302 = smul.addr %s301, 256
        %s303 = scalar_lea.vmem [#allocation4], %s302
        %s304 = smul.u32 8, %s25
        %p305 = scmp.lt.s32.totalorder %s304, 15
        %s306 = scalar_select %p305, %s304, 15
        %s307 = smul.addr %s306, 8
        %s308 = smul.addr %s307, 4
        %s309 = scalar_lea.vmem %s0, %s308
        %s310 = smul.u32 8, %s25
        %s311 = smul.u32 8, %s25
        %p312 = scmp.lt.s32.totalorder %s311, 15
        %s313 = scalar_select %p312, %s311, 15
        %s314 = smul.addr %s313, 8
        %s315 = smul.addr %s314, 4
        %s316 = scalar_lea.vmem %s1, %s315
        %s317 = smul.u32 8, %s25
        %s318 = smul.u32 8, %s25
        %v320 = vld [vmem:[%s309] sm:$0xf]
        %v321 = vld [vmem:[%s309 + $0x4] sm:$0xf]
        %v322 = vld [vmem:[%s309 + $0x8] sm:$0xf]
        %v323 = vld [vmem:[%s309 + $0xc] sm:$0xf]
        %v324 = vld [vmem:[%s309 + $0x10] sm:$0xf]
        %v325 = vld [vmem:[%s309 + $0x14] sm:$0xf]
        %v326 = vld [vmem:[%s309 + $0x18] sm:$0xf]
        %v327 = vld [vmem:[%s309 + $0x1c] sm:$0xf]
        %v328 = vld [vmem:[%s309 + $0x20] sm:$0xf]
        %v329 = vld [vmem:[%s309 + $0x24] sm:$0xf]
        %v330 = vld [vmem:[%s309 + $0x28] sm:$0xf]
        %v331 = vld [vmem:[%s309 + $0x2c] sm:$0xf]
        %v332 = vld [vmem:[%s309 + $0x30] sm:$0xf]
        %v333 = vld [vmem:[%s309 + $0x34] sm:$0xf]
        %v334 = vld [vmem:[%s309 + $0x38] sm:$0xf]
        %v335 = vld [vmem:[%s309 + $0x3c] sm:$0xf]
        %v336 = vld [vmem:[%s309 + $0x40] sm:$0xf]
        %v337 = vld [vmem:[%s309 + $0x44] sm:$0xf]
        %v338 = vld [vmem:[%s309 + $0x48] sm:$0xf]
        %v339 = vld [vmem:[%s309 + $0x4c] sm:$0xf]
        %v340 = vld [vmem:[%s309 + $0x50] sm:$0xf]
        %v341 = vld [vmem:[%s309 + $0x54] sm:$0xf]
        %v342 = vld [vmem:[%s309 + $0x58] sm:$0xf]
        %v343 = vld [vmem:[%s309 + $0x5c] sm:$0xf]
        %v344 = vld [vmem:[%s309 + $0x60] sm:$0xf]
        %v345 = vld [vmem:[%s309 + $0x64] sm:$0xf]
        %v346 = vld [vmem:[%s309 + $0x68] sm:$0xf]
        %v347 = vld [vmem:[%s309 + $0x6c] sm:$0xf]
        %v348 = vld [vmem:[%s309 + $0x70] sm:$0xf]
        %v349 = vld [vmem:[%s309 + $0x74] sm:$0xf]
        %v350 = vld [vmem:[%s309 + $0x78] sm:$0xf]
        %v351 = vld [vmem:[%s309 + $0x7c] sm:$0xf]
        %v352 = vld [vmem:[%s309 + $0x80] sm:$0xf]
        %v353 = vld [vmem:[%s309 + $0x84] sm:$0xf]
        %v354 = vld [vmem:[%s309 + $0x88] sm:$0xf]
        %v355 = vld [vmem:[%s309 + $0x8c] sm:$0xf]
        %v356 = vld [vmem:[%s309 + $0x90] sm:$0xf]
        %v357 = vld [vmem:[%s309 + $0x94] sm:$0xf]
        %v358 = vld [vmem:[%s309 + $0x98] sm:$0xf]
        %v359 = vld [vmem:[%s309 + $0x9c] sm:$0xf]
        %v360 = vld [vmem:[%s309 + $0xa0] sm:$0xf]
        %v361 = vld [vmem:[%s309 + $0xa4] sm:$0xf]
        %v362 = vld [vmem:[%s309 + $0xa8] sm:$0xf]
        %v363 = vld [vmem:[%s309 + $0xac] sm:$0xf]
        %v364 = vld [vmem:[%s309 + $0xb0] sm:$0xf]
        %v365 = vld [vmem:[%s309 + $0xb4] sm:$0xf]
        %v366 = vld [vmem:[%s309 + $0xb8] sm:$0xf]
        %v367 = vld [vmem:[%s309 + $0xbc] sm:$0xf]
        %v368 = vld [vmem:[%s309 + $0xc0] sm:$0xf]
        %v369 = vld [vmem:[%s309 + $0xc4] sm:$0xf]
        %v370 = vld [vmem:[%s309 + $0xc8] sm:$0xf]
        %v371 = vld [vmem:[%s309 + $0xcc] sm:$0xf]
        %v372 = vld [vmem:[%s309 + $0xd0] sm:$0xf]
        %v373 = vld [vmem:[%s309 + $0xd4] sm:$0xf]
        %v374 = vld [vmem:[%s309 + $0xd8] sm:$0xf]
        %v375 = vld [vmem:[%s309 + $0xdc] sm:$0xf]
        %v376 = vld [vmem:[%s309 + $0xe0] sm:$0xf]
        %v377 = vld [vmem:[%s309 + $0xe4] sm:$0xf]
        %v378 = vld [vmem:[%s309 + $0xe8] sm:$0xf]
        %v379 = vld [vmem:[%s309 + $0xec] sm:$0xf]
        %v380 = vld [vmem:[%s309 + $0xf0] sm:$0xf]
        %v381 = vld [vmem:[%s309 + $0xf4] sm:$0xf]
        %v382 = vld [vmem:[%s309 + $0xf8] sm:$0xf]
        %v383 = vld [vmem:[%s309 + $0xfc] sm:$0xf]
        %v384 = vld [vmem:[%s316] sm:$0xf]
        %v385 = vld [vmem:[%s316 + $0x4] sm:$0xf]
        %v386 = vld [vmem:[%s316 + $0x8] sm:$0xf]
        %v387 = vld [vmem:[%s316 + $0xc] sm:$0xf]
        %v388 = vld [vmem:[%s316 + $0x10] sm:$0xf]
        %v389 = vld [vmem:[%s316 + $0x14] sm:$0xf]
        %v390 = vld [vmem:[%s316 + $0x18] sm:$0xf]
        %v391 = vld [vmem:[%s316 + $0x1c] sm:$0xf]
        %v392 = vld [vmem:[%s316 + $0x20] sm:$0xf]
        %v393 = vld [vmem:[%s316 + $0x24] sm:$0xf]
        %v394 = vld [vmem:[%s316 + $0x28] sm:$0xf]
        %v395 = vld [vmem:[%s316 + $0x2c] sm:$0xf]
        %v396 = vld [vmem:[%s316 + $0x30] sm:$0xf]
        %v397 = vld [vmem:[%s316 + $0x34] sm:$0xf]
        %v398 = vld [vmem:[%s316 + $0x38] sm:$0xf]
        %v399 = vld [vmem:[%s316 + $0x3c] sm:$0xf]
        %v400 = vld [vmem:[%s316 + $0x40] sm:$0xf]
        %v401 = vld [vmem:[%s316 + $0x44] sm:$0xf]
        %v402 = vld [vmem:[%s316 + $0x48] sm:$0xf]
        %v403 = vld [vmem:[%s316 + $0x4c] sm:$0xf]
        %v404 = vld [vmem:[%s316 + $0x50] sm:$0xf]
        %v405 = vld [vmem:[%s316 + $0x54] sm:$0xf]
        %v406 = vld [vmem:[%s316 + $0x58] sm:$0xf]
        %v407 = vld [vmem:[%s316 + $0x5c] sm:$0xf]
        %v408 = vld [vmem:[%s316 + $0x60] sm:$0xf]
        %v409 = vld [vmem:[%s316 + $0x64] sm:$0xf]
        %v410 = vld [vmem:[%s316 + $0x68] sm:$0xf]
        %v411 = vld [vmem:[%s316 + $0x6c] sm:$0xf]
        %v412 = vld [vmem:[%s316 + $0x70] sm:$0xf]
        %v413 = vld [vmem:[%s316 + $0x74] sm:$0xf]
        %v414 = vld [vmem:[%s316 + $0x78] sm:$0xf]
        %v415 = vld [vmem:[%s316 + $0x7c] sm:$0xf]
        %v416 = vld [vmem:[%s316 + $0x80] sm:$0xf]
        %v417 = vld [vmem:[%s316 + $0x84] sm:$0xf]
        %v418 = vld [vmem:[%s316 + $0x88] sm:$0xf]
        %v419 = vld [vmem:[%s316 + $0x8c] sm:$0xf]
        %v420 = vld [vmem:[%s316 + $0x90] sm:$0xf]
        %v421 = vld [vmem:[%s316 + $0x94] sm:$0xf]
        %v422 = vld [vmem:[%s316 + $0x98] sm:$0xf]
        %v423 = vld [vmem:[%s316 + $0x9c] sm:$0xf]
        %v424 = vld [vmem:[%s316 + $0xa0] sm:$0xf]
        %v425 = vld [vmem:[%s316 + $0xa4] sm:$0xf]
        %v426 = vld [vmem:[%s316 + $0xa8] sm:$0xf]
        %v427 = vld [vmem:[%s316 + $0xac] sm:$0xf]
        %v428 = vld [vmem:[%s316 + $0xb0] sm:$0xf]
        %v429 = vld [vmem:[%s316 + $0xb4] sm:$0xf]
        %v430 = vld [vmem:[%s316 + $0xb8] sm:$0xf]
        %v431 = vld [vmem:[%s316 + $0xbc] sm:$0xf]
        %v432 = vld [vmem:[%s316 + $0xc0] sm:$0xf]
        %v433 = vld [vmem:[%s316 + $0xc4] sm:$0xf]
        %v434 = vld [vmem:[%s316 + $0xc8] sm:$0xf]
        %v435 = vld [vmem:[%s316 + $0xcc] sm:$0xf]
        %v436 = vld [vmem:[%s316 + $0xd0] sm:$0xf]
        %v437 = vld [vmem:[%s316 + $0xd4] sm:$0xf]
        %v438 = vld [vmem:[%s316 + $0xd8] sm:$0xf]
        %v439 = vld [vmem:[%s316 + $0xdc] sm:$0xf]
        %v440 = vld [vmem:[%s316 + $0xe0] sm:$0xf]
        %v441 = vld [vmem:[%s316 + $0xe4] sm:$0xf]
        %v442 = vld [vmem:[%s316 + $0xe8] sm:$0xf]
        %v443 = vld [vmem:[%s316 + $0xec] sm:$0xf]
        %v444 = vld [vmem:[%s316 + $0xf0] sm:$0xf]
        %v445 = vld [vmem:[%s316 + $0xf4] sm:$0xf]
        %v446 = vld [vmem:[%s316 + $0xf8] sm:$0xf]
        %v447 = vld [vmem:[%s316 + $0xfc] sm:$0xf]
        %v448 = vunpack.c.l.bf16 %v384
        %v449 = vunpack.c.l.bf16 %v385
        %v450 = vunpack.c.l.bf16 %v386
        %v451 = vunpack.c.l.bf16 %v387
        %v452 = vunpack.c.l.bf16 %v388
        %v453 = vunpack.c.l.bf16 %v389
        %v454 = vunpack.c.l.bf16 %v390
        %v455 = vunpack.c.l.bf16 %v391
        %v456 = vunpack.c.l.bf16 %v392
        %v457 = vunpack.c.l.bf16 %v393
        %v458 = vunpack.c.l.bf16 %v394
        %v459 = vunpack.c.l.bf16 %v395
        %v460 = vunpack.c.l.bf16 %v396
        %v461 = vunpack.c.l.bf16 %v397
        %v462 = vunpack.c.l.bf16 %v398
        %v463 = vunpack.c.l.bf16 %v399
        %v464 = vunpack.c.l.bf16 %v400
        %v465 = vunpack.c.l.bf16 %v401
        %v466 = vunpack.c.l.bf16 %v402
        %v467 = vunpack.c.l.bf16 %v403
        %v468 = vunpack.c.l.bf16 %v404
        %v469 = vunpack.c.l.bf16 %v405
        %v470 = vunpack.c.l.bf16 %v406
        %v471 = vunpack.c.l.bf16 %v407
        %v472 = vunpack.c.l.bf16 %v408
        %v473 = vunpack.c.l.bf16 %v409
        %v474 = vunpack.c.l.bf16 %v410
        %v475 = vunpack.c.l.bf16 %v411
        %v476 = vunpack.c.l.bf16 %v412
        %v477 = vunpack.c.l.bf16 %v413
        %v478 = vunpack.c.l.bf16 %v414
        %v479 = vunpack.c.l.bf16 %v415
        %v480 = vunpack.c.l.bf16 %v416
        %v481 = vunpack.c.l.bf16 %v417
        %v482 = vunpack.c.l.bf16 %v418
        %v483 = vunpack.c.l.bf16 %v419
        %v484 = vunpack.c.l.bf16 %v420
        %v485 = vunpack.c.l.bf16 %v421
        %v486 = vunpack.c.l.bf16 %v422
        %v487 = vunpack.c.l.bf16 %v423
        %v488 = vunpack.c.l.bf16 %v424
        %v489 = vunpack.c.l.bf16 %v425
        %v490 = vunpack.c.l.bf16 %v426
        %v491 = vunpack.c.l.bf16 %v427
        %v492 = vunpack.c.l.bf16 %v428
        %v493 = vunpack.c.l.bf16 %v429
        %v494 = vunpack.c.l.bf16 %v430
        %v495 = vunpack.c.l.bf16 %v431
        %v496 = vunpack.c.l.bf16 %v432
        %v497 = vunpack.c.l.bf16 %v433
        %v498 = vunpack.c.l.bf16 %v434
        %v499 = vunpack.c.l.bf16 %v435
        %v500 = vunpack.c.l.bf16 %v436
        %v501 = vunpack.c.l.bf16 %v437
        %v502 = vunpack.c.l.bf16 %v438
        %v503 = vunpack.c.l.bf16 %v439
        %v504 = vunpack.c.l.bf16 %v440
        %v505 = vunpack.c.l.bf16 %v441
        %v506 = vunpack.c.l.bf16 %v442
        %v507 = vunpack.c.l.bf16 %v443
        %v508 = vunpack.c.l.bf16 %v444
        %v509 = vunpack.c.l.bf16 %v445
        %v510 = vunpack.c.l.bf16 %v446
        %v511 = vunpack.c.l.bf16 %v447
        %v512 = vadd.f32 %v448, %v449
        %v513 = vadd.f32 %v512, %v450
        %v514 = vadd.f32 %v513, %v451
        %v515 = vadd.f32 %v514, %v452
        %v516 = vadd.f32 %v515, %v453
        %v517 = vadd.f32 %v516, %v454
        %v518 = vadd.f32 %v517, %v455
        %v519 = vrot.slane %v518, 4
        %v520 = vadd.f32 %v518, %v519
        %v521 = vrot.slane %v520, 2
        %v522 = vadd.f32 %v520, %v521
        %v523 = vrot.slane %v522, 1
        %v524 = vadd.f32 %v522, %v523
        %v525 = vadd.f32 %v456, %v457
        %v526 = vadd.f32 %v525, %v458
        %v527 = vadd.f32 %v526, %v459
        %v528 = vadd.f32 %v527, %v460
        %v529 = vadd.f32 %v528, %v461
        %v530 = vadd.f32 %v529, %v462
        %v531 = vadd.f32 %v530, %v463
        %v532 = vrot.slane %v531, 4
        %v533 = vadd.f32 %v531, %v532
        %v534 = vrot.slane %v533, 2
        %v535 = vadd.f32 %v533, %v534
        %v536 = vrot.slane %v535, 1
        %v537 = vadd.f32 %v535, %v536
        %v538 = vadd.f32 %v464, %v465
        %v539 = vadd.f32 %v538, %v466
        %v540 = vadd.f32 %v539, %v467
        %v541 = vadd.f32 %v540, %v468
        %v542 = vadd.f32 %v541, %v469
        %v543 = vadd.f32 %v542, %v470
        %v544 = vadd.f32 %v543, %v471
        %v545 = vrot.slane %v544, 4
        %v546 = vadd.f32 %v544, %v545
        %v547 = vrot.slane %v546, 2
        %v548 = vadd.f32 %v546, %v547
        %v549 = vrot.slane %v548, 1
        %v550 = vadd.f32 %v548, %v549
        %v551 = vadd.f32 %v472, %v473
        %v552 = vadd.f32 %v551, %v474
        %v553 = vadd.f32 %v552, %v475
        %v554 = vadd.f32 %v553, %v476
        %v555 = vadd.f32 %v554, %v477
        %v556 = vadd.f32 %v555, %v478
        %v557 = vadd.f32 %v556, %v479
        %v558 = vrot.slane %v557, 4
        %v559 = vadd.f32 %v557, %v558
        %v560 = vrot.slane %v559, 2
        %v561 = vadd.f32 %v559, %v560
        %v562 = vrot.slane %v561, 1
        %v563 = vadd.f32 %v561, %v562
        %v564 = vadd.f32 %v480, %v481
        %v565 = vadd.f32 %v564, %v482
        %v566 = vadd.f32 %v565, %v483
        %v567 = vadd.f32 %v566, %v484
        %v568 = vadd.f32 %v567, %v485
        %v569 = vadd.f32 %v568, %v486
        %v570 = vadd.f32 %v569, %v487
        %v571 = vrot.slane %v570, 4
        %v572 = vadd.f32 %v570, %v571
        %v573 = vrot.slane %v572, 2
        %v574 = vadd.f32 %v572, %v573
        %v575 = vrot.slane %v574, 1
        %v576 = vadd.f32 %v574, %v575
        %v577 = vadd.f32 %v488, %v489
        %v578 = vadd.f32 %v577, %v490
        %v579 = vadd.f32 %v578, %v491
        %v580 = vadd.f32 %v579, %v492
        %v581 = vadd.f32 %v580, %v493
        %v582 = vadd.f32 %v581, %v494
        %v583 = vadd.f32 %v582, %v495
        %v584 = vrot.slane %v583, 4
        %v585 = vadd.f32 %v583, %v584
        %v586 = vrot.slane %v585, 2
        %v587 = vadd.f32 %v585, %v586
        %v588 = vrot.slane %v587, 1
        %v589 = vadd.f32 %v587, %v588
        %v590 = vadd.f32 %v496, %v497
        %v591 = vadd.f32 %v590, %v498
        %v592 = vadd.f32 %v591, %v499
        %v593 = vadd.f32 %v592, %v500
        %v594 = vadd.f32 %v593, %v501
        %v595 = vadd.f32 %v594, %v502
        %v596 = vadd.f32 %v595, %v503
        %v597 = vrot.slane %v596, 4
        %v598 = vadd.f32 %v596, %v597
        %v599 = vrot.slane %v598, 2
        %v600 = vadd.f32 %v598, %v599
        %v601 = vrot.slane %v600, 1
        %v602 = vadd.f32 %v600, %v601
        %v603 = vadd.f32 %v504, %v505
        %v604 = vadd.f32 %v603, %v506
        %v605 = vadd.f32 %v604, %v507
        %v606 = vadd.f32 %v605, %v508
        %v607 = vadd.f32 %v606, %v509
        %v608 = vadd.f32 %v607, %v510
        %v609 = vadd.f32 %v608, %v511
        %v610 = vrot.slane %v609, 4
        %v611 = vadd.f32 %v609, %v610
        %v612 = vrot.slane %v611, 2
        %v613 = vadd.f32 %v611, %v612
        %v614 = vrot.slane %v613, 1
        %v615 = vadd.f32 %v613, %v614
        %v616 = vrcp.pop 64.0
        %v617 = vmul.f32 64.0, %v616
        %v618 = vsub.f32 1.0, %v617
        %v619 = vmul.f32 %v616, %v618
        %v620 = vadd.f32 %v616, %v619
        %vm621 = vweird.f32 %v616
        %v622 = vsel %vm621, %v616, %v620
        %v623 = vmul.f32 %v524, %v622
        %v624 = vmul.f32 %v537, %v622
        %v625 = vmul.f32 %v550, %v622
        %v626 = vmul.f32 %v563, %v622
        %v627 = vmul.f32 %v576, %v622
        %v628 = vmul.f32 %v589, %v622
        %v629 = vmul.f32 %v602, %v622
        %v630 = vmul.f32 %v615, %v622
        %v631 = vpack.c.bf16 %v623, %v623
        %v632 = vpack.c.bf16 %v624, %v624
        %v633 = vpack.c.bf16 %v625, %v625
        %v634 = vpack.c.bf16 %v626, %v626
        %v635 = vpack.c.bf16 %v627, %v627
        %v636 = vpack.c.bf16 %v628, %v628
        %v637 = vpack.c.bf16 %v629, %v629
        %v638 = vpack.c.bf16 %v630, %v630
        %v647 = vunpack.c.l.b16 %v320
        %v648 = vunpack.c.l.b16 %v321
        %v649 = vunpack.c.l.b16 %v322
        %v650 = vunpack.c.l.b16 %v323
        %v651 = vunpack.c.l.b16 %v324
        %v652 = vunpack.c.l.b16 %v325
        %v653 = vunpack.c.l.b16 %v326
        %v654 = vunpack.c.l.b16 %v327
        %v655 = vpack.c.b16 %v648, %v647
        %v656 = vpack.c.b16 %v650, %v649
        %v657 = vpack.c.b16 %v652, %v651
        %v658 = vpack.c.b16 %v654, %v653
        %663 = vmatpush.bf16.xpose.msra.mxu0 0
        %664 = vmatpush.bf16.xpose.msra.mxu0 0
        %665 = vmatpush.bf16.xpose.msra.mxu0 0
        %666 = vmatpush.bf16.xpose.msra.mxu0 0
        %667 = vmatpush.bf16.xpose.msra.mxu0 %v658
        %668 = vmatpush.bf16.xpose.msra.mxu0 %v657
        %669 = vmatpush.bf16.xpose.msra.mxu0 %v656
        %670 = vmatpush.bf16.xpose.msra.mxu0 %v655
        %671 = vmatmul.bf16.gmra.mxu0 %v631
        %v672 = vpop.f32.mrf.mxu0
        %v673 = vadd.f32 0.0, %v672
        %v674 = vpop.f32.mrf.mxu0
        %675 = vdwg.mxu0
        %v684 = vunpack.c.l.b16 %v328
        %v685 = vunpack.c.l.b16 %v329
        %v686 = vunpack.c.l.b16 %v330
        %v687 = vunpack.c.l.b16 %v331
        %v688 = vunpack.c.l.b16 %v332
        %v689 = vunpack.c.l.b16 %v333
        %v690 = vunpack.c.l.b16 %v334
        %v691 = vunpack.c.l.b16 %v335
        %v692 = vpack.c.b16 %v685, %v684
        %v693 = vpack.c.b16 %v687, %v686
        %v694 = vpack.c.b16 %v689, %v688
        %v695 = vpack.c.b16 %v691, %v690
        %700 = vmatpush.bf16.xpose.msra.mxu0 0
        %701 = vmatpush.bf16.xpose.msra.mxu0 0
        %702 = vmatpush.bf16.xpose.msra.mxu0 0
        %703 = vmatpush.bf16.xpose.msra.mxu0 0
        %704 = vmatpush.bf16.xpose.msra.mxu0 %v695
        %705 = vmatpush.bf16.xpose.msra.mxu0 %v694
        %706 = vmatpush.bf16.xpose.msra.mxu0 %v693
        %707 = vmatpush.bf16.xpose.msra.mxu0 %v692
        %708 = vmatmul.bf16.gmra.mxu0 %v632
        %v709 = vpop.f32.mrf.mxu0
        %v710 = vadd.f32 0.0, %v709
        %v711 = vpop.f32.mrf.mxu0
        %712 = vdwg.mxu0
        %v721 = vunpack.c.l.b16 %v336
        %v722 = vunpack.c.l.b16 %v337
        %v723 = vunpack.c.l.b16 %v338
        %v724 = vunpack.c.l.b16 %v339
        %v725 = vunpack.c.l.b16 %v340
        %v726 = vunpack.c.l.b16 %v341
        %v727 = vunpack.c.l.b16 %v342
        %v728 = vunpack.c.l.b16 %v343
        %v729 = vpack.c.b16 %v722, %v721
        %v730 = vpack.c.b16 %v724, %v723
        %v731 = vpack.c.b16 %v726, %v725
        %v732 = vpack.c.b16 %v728, %v727
        %737 = vmatpush.bf16.xpose.msra.mxu0 0
        %738 = vmatpush.bf16.xpose.msra.mxu0 0
        %739 = vmatpush.bf16.xpose.msra.mxu0 0
        %740 = vmatpush.bf16.xpose.msra.mxu0 0
        %741 = vmatpush.bf16.xpose.msra.mxu0 %v732
        %742 = vmatpush.bf16.xpose.msra.mxu0 %v731
        %743 = vmatpush.bf16.xpose.msra.mxu0 %v730
        %744 = vmatpush.bf16.xpose.msra.mxu0 %v729
        %745 = vmatmul.bf16.gmra.mxu0 %v633
        %v746 = vpop.f32.mrf.mxu0
        %v747 = vadd.f32 0.0, %v746
        %v748 = vpop.f32.mrf.mxu0
        %749 = vdwg.mxu0
        %v758 = vunpack.c.l.b16 %v344
        %v759 = vunpack.c.l.b16 %v345
        %v760 = vunpack.c.l.b16 %v346
        %v761 = vunpack.c.l.b16 %v347
        %v762 = vunpack.c.l.b16 %v348
        %v763 = vunpack.c.l.b16 %v349
        %v764 = vunpack.c.l.b16 %v350
        %v765 = vunpack.c.l.b16 %v351
        %v766 = vpack.c.b16 %v759, %v758
        %v767 = vpack.c.b16 %v761, %v760
        %v768 = vpack.c.b16 %v763, %v762
        %v769 = vpack.c.b16 %v765, %v764
        %774 = vmatpush.bf16.xpose.msra.mxu0 0
        %775 = vmatpush.bf16.xpose.msra.mxu0 0
        %776 = vmatpush.bf16.xpose.msra.mxu0 0
        %777 = vmatpush.bf16.xpose.msra.mxu0 0
        %778 = vmatpush.bf16.xpose.msra.mxu0 %v769
        %779 = vmatpush.bf16.xpose.msra.mxu0 %v768
        %780 = vmatpush.bf16.xpose.msra.mxu0 %v767
        %781 = vmatpush.bf16.xpose.msra.mxu0 %v766
        %782 = vmatmul.bf16.gmra.mxu0 %v634
        %v783 = vpop.f32.mrf.mxu0
        %v784 = vadd.f32 0.0, %v783
        %v785 = vpop.f32.mrf.mxu0
        %786 = vdwg.mxu0
        %v795 = vunpack.c.l.b16 %v352
        %v796 = vunpack.c.l.b16 %v353
        %v797 = vunpack.c.l.b16 %v354
        %v798 = vunpack.c.l.b16 %v355
        %v799 = vunpack.c.l.b16 %v356
        %v800 = vunpack.c.l.b16 %v357
        %v801 = vunpack.c.l.b16 %v358
        %v802 = vunpack.c.l.b16 %v359
        %v803 = vpack.c.b16 %v796, %v795
        %v804 = vpack.c.b16 %v798, %v797
        %v805 = vpack.c.b16 %v800, %v799
        %v806 = vpack.c.b16 %v802, %v801
        %811 = vmatpush.bf16.xpose.msra.mxu0 0
        %812 = vmatpush.bf16.xpose.msra.mxu0 0
        %813 = vmatpush.bf16.xpose.msra.mxu0 0
        %814 = vmatpush.bf16.xpose.msra.mxu0 0
        %815 = vmatpush.bf16.xpose.msra.mxu0 %v806
        %816 = vmatpush.bf16.xpose.msra.mxu0 %v805
        %817 = vmatpush.bf16.xpose.msra.mxu0 %v804
        %818 = vmatpush.bf16.xpose.msra.mxu0 %v803
        %819 = vmatmul.bf16.gmra.mxu0 %v635
        %v820 = vpop.f32.mrf.mxu0
        %v821 = vadd.f32 0.0, %v820
        %v822 = vpop.f32.mrf.mxu0
        %823 = vdwg.mxu0
        %v832 = vunpack.c.l.b16 %v360
        %v833 = vunpack.c.l.b16 %v361
        %v834 = vunpack.c.l.b16 %v362
        %v835 = vunpack.c.l.b16 %v363
        %v836 = vunpack.c.l.b16 %v364
        %v837 = vunpack.c.l.b16 %v365
        %v838 = vunpack.c.l.b16 %v366
        %v839 = vunpack.c.l.b16 %v367
        %v840 = vpack.c.b16 %v833, %v832
        %v841 = vpack.c.b16 %v835, %v834
        %v842 = vpack.c.b16 %v837, %v836
        %v843 = vpack.c.b16 %v839, %v838
        %848 = vmatpush.bf16.xpose.msra.mxu0 0
        %849 = vmatpush.bf16.xpose.msra.mxu0 0
        %850 = vmatpush.bf16.xpose.msra.mxu0 0
        %851 = vmatpush.bf16.xpose.msra.mxu0 0
        %852 = vmatpush.bf16.xpose.msra.mxu0 %v843
        %853 = vmatpush.bf16.xpose.msra.mxu0 %v842
        %854 = vmatpush.bf16.xpose.msra.mxu0 %v841
        %855 = vmatpush.bf16.xpose.msra.mxu0 %v840
        %856 = vmatmul.bf16.gmra.mxu0 %v636
        %v857 = vpop.f32.mrf.mxu0
        %v858 = vadd.f32 0.0, %v857
        %v859 = vpop.f32.mrf.mxu0
        %860 = vdwg.mxu0
        %v869 = vunpack.c.l.b16 %v368
        %v870 = vunpack.c.l.b16 %v369
        %v871 = vunpack.c.l.b16 %v370
        %v872 = vunpack.c.l.b16 %v371
        %v873 = vunpack.c.l.b16 %v372
        %v874 = vunpack.c.l.b16 %v373
        %v875 = vunpack.c.l.b16 %v374
        %v876 = vunpack.c.l.b16 %v375
        %v877 = vpack.c.b16 %v870, %v869
        %v878 = vpack.c.b16 %v872, %v871
        %v879 = vpack.c.b16 %v874, %v873
        %v880 = vpack.c.b16 %v876, %v875
        %885 = vmatpush.bf16.xpose.msra.mxu0 0
        %886 = vmatpush.bf16.xpose.msra.mxu0 0
        %887 = vmatpush.bf16.xpose.msra.mxu0 0
        %888 = vmatpush.bf16.xpose.msra.mxu0 0
        %889 = vmatpush.bf16.xpose.msra.mxu0 %v880
        %890 = vmatpush.bf16.xpose.msra.mxu0 %v879
        %891 = vmatpush.bf16.xpose.msra.mxu0 %v878
        %892 = vmatpush.bf16.xpose.msra.mxu0 %v877
        %893 = vmatmul.bf16.gmra.mxu0 %v637
        %v894 = vpop.f32.mrf.mxu0
        %v895 = vadd.f32 0.0, %v894
        %v896 = vpop.f32.mrf.mxu0
        %897 = vdwg.mxu0
        %v906 = vunpack.c.l.b16 %v376
        %v907 = vunpack.c.l.b16 %v377
        %v908 = vunpack.c.l.b16 %v378
        %v909 = vunpack.c.l.b16 %v379
        %v910 = vunpack.c.l.b16 %v380
        %v911 = vunpack.c.l.b16 %v381
        %v912 = vunpack.c.l.b16 %v382
        %v913 = vunpack.c.l.b16 %v383
        %v914 = vpack.c.b16 %v907, %v906
        %v915 = vpack.c.b16 %v909, %v908
        %v916 = vpack.c.b16 %v911, %v910
        %v917 = vpack.c.b16 %v913, %v912
        %922 = vmatpush.bf16.xpose.msra.mxu0 0
        %923 = vmatpush.bf16.xpose.msra.mxu0 0
        %924 = vmatpush.bf16.xpose.msra.mxu0 0
        %925 = vmatpush.bf16.xpose.msra.mxu0 0
        %926 = vmatpush.bf16.xpose.msra.mxu0 %v917
        %927 = vmatpush.bf16.xpose.msra.mxu0 %v916
        %928 = vmatpush.bf16.xpose.msra.mxu0 %v915
        %929 = vmatpush.bf16.xpose.msra.mxu0 %v914
        %930 = vmatmul.bf16.gmra.mxu0 %v638
        %v931 = vpop.f32.mrf.mxu0
        %v932 = vadd.f32 0.0, %v931
        %v933 = vpop.f32.mrf.mxu0
        %934 = vdwg.mxu0
        %v935 = vmax.f32 %v673, 0.0
        %v936 = vmax.f32 %v710, 0.0
        %v937 = vmax.f32 %v747, 0.0
        %v938 = vmax.f32 %v784, 0.0
        %v939 = vmax.f32 %v821, 0.0
        %v940 = vmax.f32 %v858, 0.0
        %v941 = vmax.f32 %v895, 0.0
        %v942 = vmax.f32 %v932, 0.0
        %v943 = vld [vmem:[%s2] sm:$0xff]
        %v944 = vld [vmem:[%s2 + $0x8] sm:$0xff]
        %v945 = vld [vmem:[%s2 + $0x10] sm:$0xff]
        %v946 = vld [vmem:[%s2 + $0x18] sm:$0xff]
        %v947 = vperm.slane %v935, 0
        %v948 = vperm.slane %v936, 0
        %v949 = vperm.slane %v937, 0
        %v950 = vperm.slane %v938, 0
        %v951 = vperm.slane %v939, 0
        %v952 = vperm.slane %v940, 0
        %v953 = vperm.slane %v941, 0
        %v954 = vperm.slane %v942, 0
        %v955 = vmul.f32 %v943, %v947
        %v956 = vmul.f32 %v944, %v947
        %v957 = vmul.f32 %v945, %v947
        %v958 = vmul.f32 %v946, %v947
        %v959 = vmul.f32 %v943, %v948
        %v960 = vmul.f32 %v944, %v948
        %v961 = vmul.f32 %v945, %v948
        %v962 = vmul.f32 %v946, %v948
        %v963 = vmul.f32 %v943, %v949
        %v964 = vmul.f32 %v944, %v949
        %v965 = vmul.f32 %v945, %v949
        %v966 = vmul.f32 %v946, %v949
        %v967 = vmul.f32 %v943, %v950
        %v968 = vmul.f32 %v944, %v950
        %v969 = vmul.f32 %v945, %v950
        %v970 = vmul.f32 %v946, %v950
        %v971 = vmul.f32 %v943, %v951
        %v972 = vmul.f32 %v944, %v951
        %v973 = vmul.f32 %v945, %v951
        %v974 = vmul.f32 %v946, %v951
        %v975 = vmul.f32 %v943, %v952
        %v976 = vmul.f32 %v944, %v952
        %v977 = vmul.f32 %v945, %v952
        %v978 = vmul.f32 %v946, %v952
        %v979 = vmul.f32 %v943, %v953
        %v980 = vmul.f32 %v944, %v953
        %v981 = vmul.f32 %v945, %v953
        %v982 = vmul.f32 %v946, %v953
        %v983 = vmul.f32 %v943, %v954
        %v984 = vmul.f32 %v944, %v954
        %v985 = vmul.f32 %v945, %v954
        %v986 = vmul.f32 %v946, %v954
        %v987 = vld [vmem:[%s3] sm:$0xff]
        %v988 = vld [vmem:[%s3 + $0x8] sm:$0xff]
        %v989 = vld [vmem:[%s3 + $0x10] sm:$0xff]
        %v990 = vld [vmem:[%s3 + $0x18] sm:$0xff]
        %v991 = vld [vmem:[%s3 + $0x20] sm:$0xff]
        %v992 = vld [vmem:[%s3 + $0x28] sm:$0xff]
        %v993 = vld [vmem:[%s3 + $0x30] sm:$0xff]
        %v994 = vld [vmem:[%s3 + $0x38] sm:$0xff]
        %vm995 = vcmask 523264
        %v997 = vsel %vm995, %v955, 0
        %v1000 = vsel %vm995, %v956, 0
        %v1003 = vsel %vm995, %v957, 0
        %v1006 = vsel %vm995, %v958, 0
        %v1009 = vsel %vm995, %v959, 0
        %v1012 = vsel %vm995, %v960, 0
        %v1015 = vsel %vm995, %v961, 0
        %v1018 = vsel %vm995, %v962, 0
        %v1021 = vsel %vm995, %v963, 0
        %v1024 = vsel %vm995, %v964, 0
        %v1027 = vsel %vm995, %v965, 0
        %v1030 = vsel %vm995, %v966, 0
        %v1033 = vsel %vm995, %v967, 0
        %v1036 = vsel %vm995, %v968, 0
        %v1039 = vsel %vm995, %v969, 0
        %v1042 = vsel %vm995, %v970, 0
        %v1045 = vsel %vm995, %v971, 0
        %v1048 = vsel %vm995, %v972, 0
        %v1051 = vsel %vm995, %v973, 0
        %v1054 = vsel %vm995, %v974, 0
        %v1057 = vsel %vm995, %v975, 0
        %v1060 = vsel %vm995, %v976, 0
        %v1063 = vsel %vm995, %v977, 0
        %v1066 = vsel %vm995, %v978, 0
        %v1069 = vsel %vm995, %v979, 0
        %v1072 = vsel %vm995, %v980, 0
        %v1075 = vsel %vm995, %v981, 0
        %v1078 = vsel %vm995, %v982, 0
        %v1081 = vsel %vm995, %v983, 0
        %v1084 = vsel %vm995, %v984, 0
        %v1087 = vsel %vm995, %v985, 0
        %v1090 = vsel %vm995, %v986, 0
        %1092 = vmatpush.msra.mxu0 0.0
        %1093 = vmatpush.msra.mxu0 0.0
        %1094 = vmatpush.msra.mxu0 0.0
        %1095 = vmatpush.msra.mxu0 0.0
        %1096 = vmatpush.msra.mxu0 0.0
        %1097 = vmatpush.msra.mxu0 0.0
        %1098 = vmatpush.msra.mxu0 0.0
        %1099 = vmatpush.msra.mxu0 0.0
        %1100 = vmatpush.msra.mxu0 %v994
        %1101 = vmatpush.msra.mxu0 %v993
        %1102 = vmatpush.msra.mxu0 %v992
        %1103 = vmatpush.msra.mxu0 %v991
        %1104 = vmatpush.msra.mxu0 %v990
        %1105 = vmatpush.msra.mxu0 %v989
        %1106 = vmatpush.msra.mxu0 %v988
        %1107 = vmatpush.msra.mxu0 %v987
        %1108 = vmatmul.f32.gmra.mxu0 %v997
        %v1109 = vpop.f32.mrf.mxu0
        %v1110 = vadd.f32 0.0, %v1109
        %1111 = vmatmul.f32.gmra.mxu0 %v1000
        %v1112 = vpop.f32.mrf.mxu0
        %v1113 = vadd.f32 0.0, %v1112
        %1114 = vmatmul.f32.gmra.mxu0 %v1003
        %v1115 = vpop.f32.mrf.mxu0
        %v1116 = vadd.f32 0.0, %v1115
        %1117 = vmatmul.f32.gmra.mxu0 %v1006
        %v1118 = vpop.f32.mrf.mxu0
        %v1119 = vadd.f32 0.0, %v1118
        %1120 = vmatmul.f32.gmra.mxu0 %v1009
        %v1121 = vpop.f32.mrf.mxu0
        %v1122 = vadd.f32 0.0, %v1121
        %1123 = vmatmul.f32.gmra.mxu0 %v1012
        %v1124 = vpop.f32.mrf.mxu0
        %v1125 = vadd.f32 0.0, %v1124
        %1126 = vmatmul.f32.gmra.mxu0 %v1015
        %v1127 = vpop.f32.mrf.mxu0
        %v1128 = vadd.f32 0.0, %v1127
        %1129 = vmatmul.f32.gmra.mxu0 %v1018
        %v1130 = vpop.f32.mrf.mxu0
        %v1131 = vadd.f32 0.0, %v1130
        %1132 = vmatmul.f32.gmra.mxu0 %v1021
        %v1133 = vpop.f32.mrf.mxu0
        %v1134 = vadd.f32 0.0, %v1133
        %1135 = vmatmul.f32.gmra.mxu0 %v1024
        %v1136 = vpop.f32.mrf.mxu0
        %v1137 = vadd.f32 0.0, %v1136
        %1138 = vmatmul.f32.gmra.mxu0 %v1027
        %v1139 = vpop.f32.mrf.mxu0
        %v1140 = vadd.f32 0.0, %v1139
        %1141 = vmatmul.f32.gmra.mxu0 %v1030
        %v1142 = vpop.f32.mrf.mxu0
        %v1143 = vadd.f32 0.0, %v1142
        %1144 = vmatmul.f32.gmra.mxu0 %v1033
        %v1145 = vpop.f32.mrf.mxu0
        %v1146 = vadd.f32 0.0, %v1145
        %1147 = vmatmul.f32.gmra.mxu0 %v1036
        %v1148 = vpop.f32.mrf.mxu0
        %v1149 = vadd.f32 0.0, %v1148
        %1150 = vmatmul.f32.gmra.mxu0 %v1039
        %v1151 = vpop.f32.mrf.mxu0
        %v1152 = vadd.f32 0.0, %v1151
        %1153 = vmatmul.f32.gmra.mxu0 %v1042
        %v1154 = vpop.f32.mrf.mxu0
        %v1155 = vadd.f32 0.0, %v1154
        %1156 = vmatmul.f32.gmra.mxu0 %v1045
        %v1157 = vpop.f32.mrf.mxu0
        %v1158 = vadd.f32 0.0, %v1157
        %1159 = vmatmul.f32.gmra.mxu0 %v1048
        %v1160 = vpop.f32.mrf.mxu0
        %v1161 = vadd.f32 0.0, %v1160
        %1162 = vmatmul.f32.gmra.mxu0 %v1051
        %v1163 = vpop.f32.mrf.mxu0
        %v1164 = vadd.f32 0.0, %v1163
        %1165 = vmatmul.f32.gmra.mxu0 %v1054
        %v1166 = vpop.f32.mrf.mxu0
        %v1167 = vadd.f32 0.0, %v1166
        %1168 = vmatmul.f32.gmra.mxu0 %v1057
        %v1169 = vpop.f32.mrf.mxu0
        %v1170 = vadd.f32 0.0, %v1169
        %1171 = vmatmul.f32.gmra.mxu0 %v1060
        %v1172 = vpop.f32.mrf.mxu0
        %v1173 = vadd.f32 0.0, %v1172
        %1174 = vmatmul.f32.gmra.mxu0 %v1063
        %v1175 = vpop.f32.mrf.mxu0
        %v1176 = vadd.f32 0.0, %v1175
        %1177 = vmatmul.f32.gmra.mxu0 %v1066
        %v1178 = vpop.f32.mrf.mxu0
        %v1179 = vadd.f32 0.0, %v1178
        %1180 = vmatmul.f32.gmra.mxu0 %v1069
        %v1181 = vpop.f32.mrf.mxu0
        %v1182 = vadd.f32 0.0, %v1181
        %1183 = vmatmul.f32.gmra.mxu0 %v1072
        %v1184 = vpop.f32.mrf.mxu0
        %v1185 = vadd.f32 0.0, %v1184
        %1186 = vmatmul.f32.gmra.mxu0 %v1075
        %v1187 = vpop.f32.mrf.mxu0
        %v1188 = vadd.f32 0.0, %v1187
        %1189 = vmatmul.f32.gmra.mxu0 %v1078
        %v1190 = vpop.f32.mrf.mxu0
        %v1191 = vadd.f32 0.0, %v1190
        %1192 = vmatmul.f32.gmra.mxu0 %v1081
        %v1193 = vpop.f32.mrf.mxu0
        %v1194 = vadd.f32 0.0, %v1193
        %1195 = vmatmul.f32.gmra.mxu0 %v1084
        %v1196 = vpop.f32.mrf.mxu0
        %v1197 = vadd.f32 0.0, %v1196
        %1198 = vmatmul.f32.gmra.mxu0 %v1087
        %v1199 = vpop.f32.mrf.mxu0
        %v1200 = vadd.f32 0.0, %v1199
        %1201 = vmatmul.f32.gmra.mxu0 %v1090
        %v1202 = vpop.f32.mrf.mxu0
        %v1203 = vadd.f32 0.0, %v1202
        %1204 = vdwg.mxu0
        %vm1205 = vcmask 261120
        %1206 = vst.msk [vmem:[%s303] sm:$0xff] %vm1205, %v1110
        %1207 = vst.msk [vmem:[%s303 + $0x8] sm:$0xff] %vm1205, %v1113
        %1208 = vst.msk [vmem:[%s303 + $0x10] sm:$0xff] %vm1205, %v1116
        %1209 = vst.msk [vmem:[%s303 + $0x18] sm:$0xff] %vm1205, %v1119
        %1210 = vst.msk [vmem:[%s303 + $0x20] sm:$0xff] %vm1205, %v1122
        %1211 = vst.msk [vmem:[%s303 + $0x28] sm:$0xff] %vm1205, %v1125
        %1212 = vst.msk [vmem:[%s303 + $0x30] sm:$0xff] %vm1205, %v1128
        %1213 = vst.msk [vmem:[%s303 + $0x38] sm:$0xff] %vm1205, %v1131
        %1214 = vst.msk [vmem:[%s303 + $0x40] sm:$0xff] %vm1205, %v1134
        %1215 = vst.msk [vmem:[%s303 + $0x48] sm:$0xff] %vm1205, %v1137
        %1216 = vst.msk [vmem:[%s303 + $0x50] sm:$0xff] %vm1205, %v1140
        %1217 = vst.msk [vmem:[%s303 + $0x58] sm:$0xff] %vm1205, %v1143
        %1218 = vst.msk [vmem:[%s303 + $0x60] sm:$0xff] %vm1205, %v1146
        %1219 = vst.msk [vmem:[%s303 + $0x68] sm:$0xff] %vm1205, %v1149
        %1220 = vst.msk [vmem:[%s303 + $0x70] sm:$0xff] %vm1205, %v1152
        %1221 = vst.msk [vmem:[%s303 + $0x78] sm:$0xff] %vm1205, %v1155
        %1222 = vst.msk [vmem:[%s303 + $0x80] sm:$0xff] %vm1205, %v1158
        %1223 = vst.msk [vmem:[%s303 + $0x88] sm:$0xff] %vm1205, %v1161
        %1224 = vst.msk [vmem:[%s303 + $0x90] sm:$0xff] %vm1205, %v1164
        %1225 = vst.msk [vmem:[%s303 + $0x98] sm:$0xff] %vm1205, %v1167
        %1226 = vst.msk [vmem:[%s303 + $0xa0] sm:$0xff] %vm1205, %v1170
        %1227 = vst.msk [vmem:[%s303 + $0xa8] sm:$0xff] %vm1205, %v1173
        %1228 = vst.msk [vmem:[%s303 + $0xb0] sm:$0xff] %vm1205, %v1176
        %1229 = vst.msk [vmem:[%s303 + $0xb8] sm:$0xff] %vm1205, %v1179
        %1230 = vst.msk [vmem:[%s303 + $0xc0] sm:$0xff] %vm1205, %v1182
        %1231 = vst.msk [vmem:[%s303 + $0xc8] sm:$0xff] %vm1205, %v1185
        %1232 = vst.msk [vmem:[%s303 + $0xd0] sm:$0xff] %vm1205, %v1188
        %1233 = vst.msk [vmem:[%s303 + $0xd8] sm:$0xff] %vm1205, %v1191
        %1234 = vst.msk [vmem:[%s303 + $0xe0] sm:$0xff] %vm1205, %v1194
        %1235 = vst.msk [vmem:[%s303 + $0xe8] sm:$0xff] %vm1205, %v1197
        %1236 = vst.msk [vmem:[%s303 + $0xf0] sm:$0xff] %vm1205, %v1200
        %1237 = vst.msk [vmem:[%s303 + $0xf8] sm:$0xff] %vm1205, %v1203
        %v1238 = vunpack.c.l.bf16 %v320
        %v1239 = vunpack.c.l.bf16 %v321
        %v1240 = vunpack.c.l.bf16 %v322
        %v1241 = vunpack.c.l.bf16 %v323
        %v1242 = vunpack.c.l.bf16 %v324
        %v1243 = vunpack.c.l.bf16 %v325
        %v1244 = vunpack.c.l.bf16 %v326
        %v1245 = vunpack.c.l.bf16 %v327
        %v1246 = vunpack.c.l.bf16 %v328
        %v1247 = vunpack.c.l.bf16 %v329
        %v1248 = vunpack.c.l.bf16 %v330
        %v1249 = vunpack.c.l.bf16 %v331
        %v1250 = vunpack.c.l.bf16 %v332
        %v1251 = vunpack.c.l.bf16 %v333
        %v1252 = vunpack.c.l.bf16 %v334
        %v1253 = vunpack.c.l.bf16 %v335
        %v1254 = vunpack.c.l.bf16 %v336
        %v1255 = vunpack.c.l.bf16 %v337
        %v1256 = vunpack.c.l.bf16 %v338
        %v1257 = vunpack.c.l.bf16 %v339
        %v1258 = vunpack.c.l.bf16 %v340
        %v1259 = vunpack.c.l.bf16 %v341
        %v1260 = vunpack.c.l.bf16 %v342
        %v1261 = vunpack.c.l.bf16 %v343
        %v1262 = vunpack.c.l.bf16 %v344
        %v1263 = vunpack.c.l.bf16 %v345
        %v1264 = vunpack.c.l.bf16 %v346
        %v1265 = vunpack.c.l.bf16 %v347
        %v1266 = vunpack.c.l.bf16 %v348
        %v1267 = vunpack.c.l.bf16 %v349
        %v1268 = vunpack.c.l.bf16 %v350
        %v1269 = vunpack.c.l.bf16 %v351
        %v1270 = vunpack.c.l.bf16 %v352
        %v1271 = vunpack.c.l.bf16 %v353
        %v1272 = vunpack.c.l.bf16 %v354
        %v1273 = vunpack.c.l.bf16 %v355
        %v1274 = vunpack.c.l.bf16 %v356
        %v1275 = vunpack.c.l.bf16 %v357
        %v1276 = vunpack.c.l.bf16 %v358
        %v1277 = vunpack.c.l.bf16 %v359
        %v1278 = vunpack.c.l.bf16 %v360
        %v1279 = vunpack.c.l.bf16 %v361
        %v1280 = vunpack.c.l.bf16 %v362
        %v1281 = vunpack.c.l.bf16 %v363
        %v1282 = vunpack.c.l.bf16 %v364
        %v1283 = vunpack.c.l.bf16 %v365
        %v1284 = vunpack.c.l.bf16 %v366
        %v1285 = vunpack.c.l.bf16 %v367
        %v1286 = vunpack.c.l.bf16 %v368
        %v1287 = vunpack.c.l.bf16 %v369
        %v1288 = vunpack.c.l.bf16 %v370
        %v1289 = vunpack.c.l.bf16 %v371
        %v1290 = vunpack.c.l.bf16 %v372
        %v1291 = vunpack.c.l.bf16 %v373
        %v1292 = vunpack.c.l.bf16 %v374
        %v1293 = vunpack.c.l.bf16 %v375
        %v1294 = vunpack.c.l.bf16 %v376
        %v1295 = vunpack.c.l.bf16 %v377
        %v1296 = vunpack.c.l.bf16 %v378
        %v1297 = vunpack.c.l.bf16 %v379
        %v1298 = vunpack.c.l.bf16 %v380
        %v1299 = vunpack.c.l.bf16 %v381
        %v1300 = vunpack.c.l.bf16 %v382
        %v1301 = vunpack.c.l.bf16 %v383
        %v1302 = vadd.f32 %v1238, %v1239
        %v1303 = vadd.f32 %v1302, %v1240
        %v1304 = vadd.f32 %v1303, %v1241
        %v1305 = vadd.f32 %v1304, %v1242
        %v1306 = vadd.f32 %v1305, %v1243
        %v1307 = vadd.f32 %v1306, %v1244
        %v1308 = vadd.f32 %v1307, %v1245
        %v1309 = vrot.slane %v1308, 4
        %v1310 = vadd.f32 %v1308, %v1309
        %v1311 = vrot.slane %v1310, 2
        %v1312 = vadd.f32 %v1310, %v1311
        %v1313 = vrot.slane %v1312, 1
        %v1314 = vadd.f32 %v1312, %v1313
        %v1315 = vadd.f32 %v1246, %v1247
        %v1316 = vadd.f32 %v1315, %v1248
        %v1317 = vadd.f32 %v1316, %v1249
        %v1318 = vadd.f32 %v1317, %v1250
        %v1319 = vadd.f32 %v1318, %v1251
        %v1320 = vadd.f32 %v1319, %v1252
        %v1321 = vadd.f32 %v1320, %v1253
        %v1322 = vrot.slane %v1321, 4
        %v1323 = vadd.f32 %v1321, %v1322
        %v1324 = vrot.slane %v1323, 2
        %v1325 = vadd.f32 %v1323, %v1324
        %v1326 = vrot.slane %v1325, 1
        %v1327 = vadd.f32 %v1325, %v1326
        %v1328 = vadd.f32 %v1254, %v1255
        %v1329 = vadd.f32 %v1328, %v1256
        %v1330 = vadd.f32 %v1329, %v1257
        %v1331 = vadd.f32 %v1330, %v1258
        %v1332 = vadd.f32 %v1331, %v1259
        %v1333 = vadd.f32 %v1332, %v1260
        %v1334 = vadd.f32 %v1333, %v1261
        %v1335 = vrot.slane %v1334, 4
        %v1336 = vadd.f32 %v1334, %v1335
        %v1337 = vrot.slane %v1336, 2
        %v1338 = vadd.f32 %v1336, %v1337
        %v1339 = vrot.slane %v1338, 1
        %v1340 = vadd.f32 %v1338, %v1339
        %v1341 = vadd.f32 %v1262, %v1263
        %v1342 = vadd.f32 %v1341, %v1264
        %v1343 = vadd.f32 %v1342, %v1265
        %v1344 = vadd.f32 %v1343, %v1266
        %v1345 = vadd.f32 %v1344, %v1267
        %v1346 = vadd.f32 %v1345, %v1268
        %v1347 = vadd.f32 %v1346, %v1269
        %v1348 = vrot.slane %v1347, 4
        %v1349 = vadd.f32 %v1347, %v1348
        %v1350 = vrot.slane %v1349, 2
        %v1351 = vadd.f32 %v1349, %v1350
        %v1352 = vrot.slane %v1351, 1
        %v1353 = vadd.f32 %v1351, %v1352
        %v1354 = vadd.f32 %v1270, %v1271
        %v1355 = vadd.f32 %v1354, %v1272
        %v1356 = vadd.f32 %v1355, %v1273
        %v1357 = vadd.f32 %v1356, %v1274
        %v1358 = vadd.f32 %v1357, %v1275
        %v1359 = vadd.f32 %v1358, %v1276
        %v1360 = vadd.f32 %v1359, %v1277
        %v1361 = vrot.slane %v1360, 4
        %v1362 = vadd.f32 %v1360, %v1361
        %v1363 = vrot.slane %v1362, 2
        %v1364 = vadd.f32 %v1362, %v1363
        %v1365 = vrot.slane %v1364, 1
        %v1366 = vadd.f32 %v1364, %v1365
        %v1367 = vadd.f32 %v1278, %v1279
        %v1368 = vadd.f32 %v1367, %v1280
        %v1369 = vadd.f32 %v1368, %v1281
        %v1370 = vadd.f32 %v1369, %v1282
        %v1371 = vadd.f32 %v1370, %v1283
        %v1372 = vadd.f32 %v1371, %v1284
        %v1373 = vadd.f32 %v1372, %v1285
        %v1374 = vrot.slane %v1373, 4
        %v1375 = vadd.f32 %v1373, %v1374
        %v1376 = vrot.slane %v1375, 2
        %v1377 = vadd.f32 %v1375, %v1376
        %v1378 = vrot.slane %v1377, 1
        %v1379 = vadd.f32 %v1377, %v1378
        %v1380 = vadd.f32 %v1286, %v1287
        %v1381 = vadd.f32 %v1380, %v1288
        %v1382 = vadd.f32 %v1381, %v1289
        %v1383 = vadd.f32 %v1382, %v1290
        %v1384 = vadd.f32 %v1383, %v1291
        %v1385 = vadd.f32 %v1384, %v1292
        %v1386 = vadd.f32 %v1385, %v1293
        %v1387 = vrot.slane %v1386, 4
        %v1388 = vadd.f32 %v1386, %v1387
        %v1389 = vrot.slane %v1388, 2
        %v1390 = vadd.f32 %v1388, %v1389
        %v1391 = vrot.slane %v1390, 1
        %v1392 = vadd.f32 %v1390, %v1391
        %v1393 = vadd.f32 %v1294, %v1295
        %v1394 = vadd.f32 %v1393, %v1296
        %v1395 = vadd.f32 %v1394, %v1297
        %v1396 = vadd.f32 %v1395, %v1298
        %v1397 = vadd.f32 %v1396, %v1299
        %v1398 = vadd.f32 %v1397, %v1300
        %v1399 = vadd.f32 %v1398, %v1301
        %v1400 = vrot.slane %v1399, 4
        %v1401 = vadd.f32 %v1399, %v1400
        %v1402 = vrot.slane %v1401, 2
        %v1403 = vadd.f32 %v1401, %v1402
        %v1404 = vrot.slane %v1403, 1
        %v1405 = vadd.f32 %v1403, %v1404
        %v1406 = vmul.f32 %v1314, %v622
        %v1407 = vmul.f32 %v1327, %v622
        %v1408 = vmul.f32 %v1340, %v622
        %v1409 = vmul.f32 %v1353, %v622
        %v1410 = vmul.f32 %v1366, %v622
        %v1411 = vmul.f32 %v1379, %v622
        %v1412 = vmul.f32 %v1392, %v622
        %v1413 = vmul.f32 %v1405, %v622
        %v1414 = vld [vmem:[%s4] sm:$0xf]
        %v1415 = vld [vmem:[%s4 + $0x4] sm:$0xf]
        %v1416 = vld [vmem:[%s4 + $0x8] sm:$0xf]
        %v1417 = vld [vmem:[%s4 + $0xc] sm:$0xf]
        %v1418 = vld [vmem:[%s4 + $0x10] sm:$0xf]
        %v1419 = vld [vmem:[%s4 + $0x14] sm:$0xf]
        %v1420 = vld [vmem:[%s4 + $0x18] sm:$0xf]
        %v1421 = vld [vmem:[%s4 + $0x1c] sm:$0xf]
        %v1422 = vld [vmem:[%s4 + $0x20] sm:$0xf]
        %v1423 = vld [vmem:[%s4 + $0x24] sm:$0xf]
        %v1424 = vld [vmem:[%s4 + $0x28] sm:$0xf]
        %v1425 = vld [vmem:[%s4 + $0x2c] sm:$0xf]
        %v1426 = vld [vmem:[%s4 + $0x30] sm:$0xf]
        %v1427 = vld [vmem:[%s4 + $0x34] sm:$0xf]
        %v1428 = vld [vmem:[%s4 + $0x38] sm:$0xf]
        %v1429 = vld [vmem:[%s4 + $0x3c] sm:$0xf]
        %v1430 = vunpack.c.l.bf16 %v1414
        %v1431 = vunpack.c.l.bf16 %v1415
        %v1432 = vunpack.c.l.bf16 %v1416
        %v1433 = vunpack.c.l.bf16 %v1417
        %v1434 = vunpack.c.l.bf16 %v1418
        %v1435 = vunpack.c.l.bf16 %v1419
        %v1436 = vunpack.c.l.bf16 %v1420
        %v1437 = vunpack.c.l.bf16 %v1421
        %v1438 = vunpack.c.l.bf16 %v1422
        %v1439 = vunpack.c.l.bf16 %v1423
        %v1440 = vunpack.c.l.bf16 %v1424
        %v1441 = vunpack.c.l.bf16 %v1425
        %v1442 = vunpack.c.l.bf16 %v1426
        %v1443 = vunpack.c.l.bf16 %v1427
        %v1444 = vunpack.c.l.bf16 %v1428
        %v1445 = vunpack.c.l.bf16 %v1429
        %v1446 = vld [vmem:[%s5] sm:$0x1]
        %v1448 = vperm.slane %v1446, 0
        %vm1458 = vcmask 1041409
        %v1459 = vsel %vm1458, %v1407, %v1406
        %vm1460 = vcmask 1042434
        %v1461 = vsel %vm1460, %v1408, %v1459
        %vm1462 = vcmask 1043459
        %v1463 = vsel %vm1462, %v1409, %v1461
        %vm1464 = vcmask 1044484
        %v1465 = vsel %vm1464, %v1410, %v1463
        %vm1466 = vcmask 1045509
        %v1467 = vsel %vm1466, %v1411, %v1465
        %vm1468 = vcmask 1046534
        %v1469 = vsel %vm1468, %v1412, %v1467
        %vm1470 = vcmask 1047559
        %v1471 = vsel %vm1470, %v1413, %v1469
        %1473 = vmatpush.msra.mxu0 %v1445
        %1474 = vmatpush.msra.mxu0 %v1444
        %1475 = vmatpush.msra.mxu0 %v1443
        %1476 = vmatpush.msra.mxu0 %v1442
        %1477 = vmatpush.msra.mxu0 %v1441
        %1478 = vmatpush.msra.mxu0 %v1440
        %1479 = vmatpush.msra.mxu0 %v1439
        %1480 = vmatpush.msra.mxu0 %v1438
        %1481 = vmatpush.msra.mxu0 %v1437
        %1482 = vmatpush.msra.mxu0 %v1436
        %1483 = vmatpush.msra.mxu0 %v1435
        %1484 = vmatpush.msra.mxu0 %v1434
        %1485 = vmatpush.msra.mxu0 %v1433
        %1486 = vmatpush.msra.mxu0 %v1432
        %1487 = vmatpush.msra.mxu0 %v1431
        %1488 = vmatpush.msra.mxu0 %v1430
        %1489 = vmatmul.f32.gmra.mxu0 %v1471
        %v1490 = vpop.f32.mrf.mxu0
        %v1491 = vadd.f32 %v1448, %v1490
        %1492 = vdwg.mxu0
        %1493 = vst [vmem:[%s296] sm:$0xff] %v1491
        %s1494 = sand.u32 %s169, 1
        %s1495 = scalar_lea.sflag [#allocation3], %s1494
        %s1496 = sand.u32 %s169, 1
        %s1497 = smul.addr %s1496, 8
        %s1498 = scalar_lea.vmem [#allocation2], %s1497
        %s1499 = sand.u32 %s195, 1
        %s1500 = scalar_lea.sflag [#allocation5], %s1499
        %s1501 = sand.u32 %s195, 1
        %s1502 = smul.addr %s1501, 256
        %s1503 = scalar_lea.vmem [#allocation4], %s1502
        // Predicated region
        $region45: #{gcam_forward.1} parent=43 // pred_check
          %p1504 = pneg %p179
        $region46: #{gcam_forward.1} parent=43 // pred_check_branch
          %1506 = sbr.rel (%p1504) target = $region48
        $region47: #{gcam_forward.1} parent=43 // pred_region
          %1508 = vsyncadd %s1495, 0
          %s1509 = smul.addr %s25, 8
          %s1510 = scalar_lea.hbm %s6, %s1509
          %s1512 = sshll.u32 %s1498, 4
          %s1513 = int_to_ptr.vmem [resolvable:$true] %s1512
          %s1514 = sshll.u32 %s1510, 4
          %s1515 = int_to_ptr.hbm [resolvable:$true] %s1514
          %1517 = dma.vmem_to_hbm [thread:$0]  %s1513, 128, %s1515, %s1495
        $region48: #{gcam_forward.1} parent=43 // pred_fallthru
          _
        // Predicated region
        $region49: #{gcam_forward.1} parent=43 // pred_check
          %p1518 = pneg %p205
        $region50: #{gcam_forward.1} parent=43 // pred_check_branch
          %1520 = sbr.rel (%p1518) target = $region52
        $region51: #{gcam_forward.1} parent=43 // pred_region
          %s1521 = smul.u32 8, %s25
          %1523 = vsyncadd %s1500, 0
          %s1524 = smul.addr %s1521, 4
          %s1525 = smul.addr %s1524, 8
          %s1526 = scalar_lea.hbm %s7, %s1525
          %s1527 = sshll.u32 %s1503, 4
          %s1528 = int_to_ptr.vmem [resolvable:$true] %s1527
          %s1529 = sshll.u32 %s1526, 4
          %s1530 = int_to_ptr.hbm [resolvable:$true] %s1529
          %1535 = dma.vmem_to_hbm [thread:$0]  %s1528, 4096, %s1530, %s1500, 128, 128, 8
        $region52: #{gcam_forward.1} parent=43 // pred_fallthru
          _
      $region44: #{gcam_forward.1} parent=5 // pred_fallthru
        _
      %p1536 = scmp.le.s32.totalorder 2, %s20
      // Predicated region
      $region53: #{gcam_forward.1} parent=5 // pred_check
        %p1537 = pneg %p1536
      $region54: #{gcam_forward.1} parent=5 // pred_check_branch
        %1539 = sbr.rel (%p1537) target = $region56
      $region55: #{gcam_forward.1} parent=5 // pred_region
        %s1540 = ssub.s32 %s20, 2
        // Predicated region
        $region57: #{gcam_forward.1} parent=55 // pred_check
          %p1541 = pneg %p185
        $region58: #{gcam_forward.1} parent=55 // pred_check_branch
          %1543 = sbr.rel (%p1541) target = $region60
        $region59: #{gcam_forward.1} parent=55 // pred_region
          %s1544 = sand.u32 %s170, 1
          %s1545 = scalar_lea.sflag [#allocation3], %s1544
          %s1546 = sand.u32 %s170, 1
          %s1547 = smul.addr %s1546, 8
          %s1548 = scalar_lea.vmem [#allocation2], %s1547
          %1550 = dma.done %s1545, 128
        $region60: #{gcam_forward.1} parent=55 // pred_fallthru
          _
        // Predicated region
        $region61: #{gcam_forward.1} parent=55 // pred_check
          %p1551 = pneg %p211
        $region62: #{gcam_forward.1} parent=55 // pred_check_branch
          %1553 = sbr.rel (%p1551) target = $region64
        $region63: #{gcam_forward.1} parent=55 // pred_region
          %s1554 = sand.u32 %s196, 1
          %s1555 = scalar_lea.sflag [#allocation5], %s1554
          %s1556 = sand.u32 %s196, 1
          %s1557 = smul.addr %s1556, 256
          %s1558 = scalar_lea.vmem [#allocation4], %s1557
          %1560 = dma.done %s1555, 4096
        $region64: #{gcam_forward.1} parent=55 // pred_fallthru
          _
      $region56: #{gcam_forward.1} parent=5 // pred_fallthru
        _
    $region6: #{gcam_forward.1} parent=1 // loop_footer
      %s24 = sadd.s32 1, %s20
    $region7: #{gcam_forward.1} parent=1 // loop_footer_branch
      %19 = sbr.rel target = $region3
    $region8: #{gcam_forward.1} parent=1 // loop_exit
      _
    %1561 = vsyncpa [#allocation3], 1
    %s1562 = scalar_lea.sflag [#allocation3], 1
    %1563 = vsyncpa %s1562, 1
    %1564 = vsyncpa [#allocation5], 1
    %s1565 = scalar_lea.sflag [#allocation5], 1
    %1566 = vsyncpa %s1565, 1

</llo_original>
